<compile_context>
chip_gen: v6e
topology: v6e:2x2x1
jax: 0.10.0
libtpu: 0.0.40
codegen_flags: <defaults>
</compile_context>

<pallas_src>
import functools

import numpy as np

import jax
import jax.numpy as jnp
from jax import lax
from jax.experimental import pallas as pl
from jax.experimental.pallas import tpu as pltpu


# ----------------------------------------------------------------------------
# Plain-JAX glue: bilinear resize (align_corners=False) as two small matmuls
# ----------------------------------------------------------------------------
def _interp_matrix(out_size, in_size):
    scale = in_size / out_size
    c = (np.arange(out_size, dtype=np.float64) + 0.5) * scale - 0.5
    c = np.clip(c, 0.0, in_size - 1)
    lo = np.floor(c).astype(np.int64)
    hi = np.minimum(lo + 1, in_size - 1)
    frac = (c - lo).astype(np.float32)
    m = np.zeros((out_size, in_size), dtype=np.float32)
    m[np.arange(out_size), lo] += 1.0 - frac
    m[np.arange(out_size), hi] += frac
    return jnp.asarray(m)


def bilinear_resize(x, out_h, out_w):
    """F.interpolate(mode='bilinear', align_corners=False) in matrix form."""
    in_h, in_w = x.shape[-2], x.shape[-1]
    if (in_h, in_w) == (out_h, out_w):
        return x
    ly = _interp_matrix(out_h, in_h)          # (out_h, in_h)
    lx = _interp_matrix(out_w, in_w)          # (out_w, in_w)
    return jnp.einsum('ab,...bc,dc->...ad', ly, x, lx,
                      precision=lax.Precision.HIGHEST)


# ----------------------------------------------------------------------------
# VMEM budgeting (generation-aware)
# ----------------------------------------------------------------------------
def _vmem_cap_bytes():
    try:
        cap = int(pltpu.get_tpu_info().vmem_capacity_bytes)
        if cap > 0:
            return cap
    except Exception:
        pass
    return 64 << 20        # conservative default (v7x per-TensorCore VMEM)


def _vmem_limit(needed_bytes, cap):
    return int(min(max(needed_bytes + (4 << 20), 16 << 20), int(0.9 * cap)))


def _pick_tile(total, per_col_bytes, budget):
    """Largest multiple-of-128 divisor of `total` whose block fits `budget`."""
    if total % 128 != 0:
        return total       # TODO(synk): ragged-HW tiling
    best = 128
    cand = 128
    while cand <= total:
        if total % cand == 0 and cand * per_col_bytes <= budget:
            best = cand
        cand += 128
    return best


# ----------------------------------------------------------------------------
# In-kernel helpers (shared by the fused and the two-pass kernels)
# ----------------------------------------------------------------------------
def _accum_similarity(cf_ref):
    """s_full[f] = sum_c cf[c, 0] * cf[c, f]  -- (F, T) f32 accumulator.

    One (F, T) plane is loaded per C iteration (lazy per-plane upcast): the
    multiply runs in the streamed dtype (bf16 on v6e/v7x when fed bf16),
    accumulation is f32; no full-block f32 copy is materialized."""
    c_c, f_dim, t_dim = cf_ref.shape[1], cf_ref.shape[2], cf_ref.shape[3]

    def body(c, acc):
        plane = cf_ref[0, c]                              # (F, T), input dtype
        prod = plane * plane[0:1, :]                      # frame-0 row broadcast
        return acc + prod.astype(jnp.float32)

    return lax.fori_loop(0, c_c, body,
                         jnp.zeros((f_dim, t_dim), jnp.float32))


def _apply_match(cf_ref, gs, vt, vr, dec_ref, cm_ref):
    """Masked softmax over R + decoder/c_mask/c_match writes for one HW tile."""
    c_c = cf_ref.shape[1]

    masked_vec = gs * vr                                       # (R, T)
    max_vec = jnp.max(masked_vec, axis=0, keepdims=True)       # (1, T)
    masked_exps = jnp.exp(masked_vec - max_vec) * vr           # (R, T)
    masked_sums = jnp.sum(masked_exps, axis=0, keepdims=True)  # (1, T)
    masked_sums = masked_sums + (masked_sums < 1e-4).astype(jnp.float32)
    # exact division (tiny vs. the mem-bound stream; keeps f32 tolerances)
    c_match = (masked_exps / masked_sums) * (1.0 - vt)         # (R, T)

    cm_ref[0] = c_match
    c_mask = 1.0 - jnp.sum(c_match * vr, axis=0, keepdims=True)  # (1, T)

    def body(c, carry):
        plane = cf_ref[0, c].astype(jnp.float32)               # lazy upcast
        dec_row = (plane[0:1, :] * vt +
                   jnp.sum(plane[1:, :] * c_match, axis=0, keepdims=True))
        dec_ref[0, pl.ds(c, 1), :] = dec_row
        return carry

    lax.fori_loop(0, c_c, body, 0)
    dec_ref[0, c_c:c_c + 1, :] = c_mask


# ----------------------------------------------------------------------------
# Kernel bodies
# ----------------------------------------------------------------------------
def ctx_fused_kernel(cf_ref, vt_ref, vr_ref, dec_ref, cm_ref, *, normalize):
    # cf_ref : (1, C, F, HW)      vt_ref: (1, 1, HW)      vr_ref: (1, R, HW)
    # dec_ref: (1, C+1, HW) = [decoder | c_mask]   cm_ref: (1, R, HW) = c_match
    c_c = cf_ref.shape[1]
    vt = vt_ref[0]
    vr = vr_ref[0]

    vmap = vt * vr                                             # (R, HW)
    v_sum = jnp.sum(vmap, axis=-1, keepdims=True)              # (R, 1)
    v_zero = (v_sum < 1e-4).astype(jnp.float32)
    v_sum = v_sum + v_zero

    s_full = _accum_similarity(cf_ref)                         # (F, HW)
    gs = jnp.sum(s_full[1:, :] * vmap, axis=-1, keepdims=True)  # (R, 1)
    if normalize:
        gs = gs / (v_sum * float(c_c))
    gs = gs * (1.0 - v_zero)

    _apply_match(cf_ref, gs, vt, vr, dec_ref, cm_ref)


def ctx_gs_kernel(cf_ref, vt_ref, vr_ref, gs_ref, vs_ref):
    # Pass 1 of the tiled path: accumulate gs / v_sum over HW tiles.
    @pl.when(pl.program_id(1) == 0)
    def _():
        gs_ref[...] = jnp.zeros_like(gs_ref)
        vs_ref[...] = jnp.zeros_like(vs_ref)

    vt = vt_ref[0]
    vr = vr_ref[0]
    vmap = vt * vr                                             # (R, T)
    s_full = _accum_similarity(cf_ref)                         # (F, T)
    gs_ref[0] = gs_ref[0] + jnp.sum(s_full[1:, :] * vmap, axis=-1, keepdims=True)
    vs_ref[0] = vs_ref[0] + jnp.sum(vmap, axis=-1, keepdims=True)


def ctx_apply_kernel(gs_ref, cf_ref, vt_ref, vr_ref, dec_ref, cm_ref):
    # Pass 2 of the tiled path: per-pixel masked softmax + decoder assembly.
    _apply_match(cf_ref, gs_ref[0], vt_ref[0], vr_ref[0], dec_ref, cm_ref)


def add_border_kernel(ru_ref, vt_ref, bd_ref, o_ref, *, r_half):
    # ru_ref: (1, R, T)  vt_ref/bd_ref: (1, 1, T)  o_ref: (1, 3, F, T)
    ru = ru_ref[0]                                             # (R, T)
    vt = vt_ref[0]                                             # (1, T)
    border = bd_ref[0]                                         # (1, T)
    r_dim = ru.shape[0]

    pieces = []
    if r_half > 0:
        pieces.append(ru[:r_half, :])
    pieces.append(vt)
    if r_dim - r_half > 0:
        pieces.append(ru[r_half:, :])
    x = jnp.concatenate(pieces, axis=0) if len(pieces) > 1 else pieces[0]  # (F, T)

    keep = 1.0 - border
    masked = x * keep                                          # (F, T)
    o_ref[0, 0] = masked + border        # red: border painted in
    o_ref[0, 1] = masked                 # green
    o_ref[0, 2] = masked                 # blue


# ----------------------------------------------------------------------------
# pallas_call wrappers
# ----------------------------------------------------------------------------
def _ctx_matching(cf, vt_flat, vr_flat, normalize, budget, cap):
    b, c_c, f_dim, hw = cf.shape
    r_dim = f_dim - 1
    esz = jnp.dtype(cf.dtype).itemsize

    io_col = c_c * f_dim * esz + (1 + r_dim) * 4 + (c_c + 1 + r_dim) * 4
    tmp_col = (f_dim + 4 * r_dim + 4) * 4
    fused_bytes = (2 * io_col + tmp_col) * hw

    out_shapes = (jax.ShapeDtypeStruct((b, c_c + 1, hw), jnp.float32),
                  jax.ShapeDtypeStruct((b, r_dim, hw), jnp.float32))

    if fused_bytes <= budget or hw % 128 != 0:
        # Fused single-pass: c_feats streamed from HBM exactly once per batch.
        dec, cm = pl.pallas_call(
            functools.partial(ctx_fused_kernel, normalize=normalize),
            out_shape=out_shapes,
            grid=(b,),
            in_specs=[
                pl.BlockSpec((1, c_c, f_dim, hw), lambda i: (i, 0, 0, 0)),
                pl.BlockSpec((1, 1, hw), lambda i: (i, 0, 0)),
                pl.BlockSpec((1, r_dim, hw), lambda i: (i, 0, 0)),
            ],
            out_specs=[
                pl.BlockSpec((1, c_c + 1, hw), lambda i: (i, 0, 0)),
                pl.BlockSpec((1, r_dim, hw), lambda i: (i, 0, 0)),
            ],
            compiler_params=pltpu.CompilerParams(
                dimension_semantics=("parallel",),
                vmem_limit_bytes=_vmem_limit(fused_bytes, cap),
            ),
        )(cf, vt_flat, vr_flat)
        return dec, cm

    # Two-pass HW-tiled path (v7x small-VMEM / production shapes).
    col = 2 * io_col + tmp_col
    tile = _pick_tile(hw, col, budget)
    n_t = hw // tile
    limit = _vmem_limit(col * tile, cap)

    gs_raw, vsum = pl.pallas_call(
        ctx_gs_kernel,
        out_shape=(jax.ShapeDtypeStruct((b, r_dim, 1), jnp.float32),
                   jax.ShapeDtypeStruct((b, r_dim, 1), jnp.float32)),
        grid=(b, n_t),
        in_specs=[
            pl.BlockSpec((1, c_c, f_dim, tile), lambda i, t: (i, 0, 0, t)),
            pl.BlockSpec((1, 1, tile), lambda i, t: (i, 0, t)),
            pl.BlockSpec((1, r_dim, tile), lambda i, t: (i, 0, t)),
        ],
        out_specs=[
            pl.BlockSpec((1, r_dim, 1), lambda i, t: (i, 0, 0)),
            pl.BlockSpec((1, r_dim, 1), lambda i, t: (i, 0, 0)),
        ],
        compiler_params=pltpu.CompilerParams(
            dimension_semantics=("parallel", "arbitrary"),
            vmem_limit_bytes=limit,
        ),
    )(cf, vt_flat, vr_flat)

    # Finalize gs on tiny (b, R, 1) arrays (plain XLA, negligible).
    v_zero = (vsum < 1e-4).astype(jnp.float32)
    v_sum = vsum + v_zero
    gs = gs_raw / (v_sum * float(c_c)) if normalize else gs_raw
    gs = gs * (1.0 - v_zero)

    dec, cm = pl.pallas_call(
        ctx_apply_kernel,
        out_shape=out_shapes,
        grid=(b, n_t),
        in_specs=[
            pl.BlockSpec((1, r_dim, 1), lambda i, t: (i, 0, 0)),
            pl.BlockSpec((1, c_c, f_dim, tile), lambda i, t: (i, 0, 0, t)),
            pl.BlockSpec((1, 1, tile), lambda i, t: (i, 0, t)),
            pl.BlockSpec((1, r_dim, tile), lambda i, t: (i, 0, t)),
        ],
        out_specs=[
            pl.BlockSpec((1, c_c + 1, tile), lambda i, t: (i, 0, t)),
            pl.BlockSpec((1, r_dim, tile), lambda i, t: (i, 0, t)),
        ],
        compiler_params=pltpu.CompilerParams(
            dimension_semantics=("parallel", "parallel"),
            vmem_limit_bytes=limit,
        ),
    )(gs, cf, vt_flat, vr_flat)
    return dec, cm


def _add_border(ru_flat, vt_flat, border_flat, r_half, budget, cap):
    b, r_dim, hw2 = ru_flat.shape
    f_dim = r_dim + 1
    col = 2 * ((r_dim + 2) * 4 + 3 * f_dim * 4) + (2 * f_dim + 2) * 4
    tile = _pick_tile(hw2, col, budget)
    n_t = hw2 // tile

    return pl.pallas_call(
        functools.partial(add_border_kernel, r_half=r_half),
        out_shape=jax.ShapeDtypeStruct((b, 3, f_dim, hw2), jnp.float32),
        grid=(b, n_t),
        in_specs=[
            pl.BlockSpec((1, r_dim, tile), lambda i, t: (i, 0, t)),
            pl.BlockSpec((1, 1, tile), lambda i, t: (i, 0, t)),
            pl.BlockSpec((1, 1, tile), lambda i, t: (i, 0, t)),
        ],
        out_specs=pl.BlockSpec((1, 3, f_dim, tile), lambda i, t: (i, 0, 0, t)),
        compiler_params=pltpu.CompilerParams(
            dimension_semantics=("parallel", "parallel"),
            vmem_limit_bytes=_vmem_limit(col * tile, cap),
        ),
    )(ru_flat, vt_flat, border_flat)


# ----------------------------------------------------------------------------
# Forward wrapper
# ----------------------------------------------------------------------------
def cpn_context_matching(c_feats, v_t, v_aligned, normalize=True,
                         *, vmem_budget_bytes=None):
    v_t = v_t.astype(jnp.float32)
    v_aligned = v_aligned.astype(jnp.float32)

    b, c_c, f_dim, h, w = c_feats.shape
    r_dim = f_dim - 1
    big_h, big_w = v_t.shape[2], v_t.shape[3]
    hw = h * w
    hw2 = big_h * big_w

    cap = _vmem_cap_bytes()
    budget = (int(vmem_budget_bytes) if vmem_budget_bytes is not None
              else int(0.7 * cap))

    # Mask resizes + thresholds (glue, matmul-form resize).
    v_t_res = (bilinear_resize(v_t, h, w) > 0.5).astype(jnp.float32)          # (b,1,h,w)
    vr = (bilinear_resize(v_aligned[:, 0], h, w) > 0.5).astype(jnp.float32)   # (b,R,h,w)

    # Native layout (b, C, F, H*W): a free reshape -- no wrapper transpose or
    # dtype-cast HBM round trip of the largest tensor.
    cf = c_feats.reshape(b, c_c, f_dim, hw)
    vt_flat = v_t_res.reshape(b, 1, hw)
    vr_flat = vr.reshape(b, r_dim, hw)

    dec_out, cm_out = _ctx_matching(cf, vt_flat, vr_flat, normalize, budget, cap)

    out_cat = dec_out.reshape(b, c_c + 1, h, w)     # [decoder_input | c_mask]
    c_mask = out_cat[:, c_c:c_c + 1]                # tiny (b,1,h,w) slice
    c_match0 = cm_out.reshape(b, r_dim, h, w)       # == torch c_match[:, 0]

    # ref_importance: upsample c_match, insert v_t row and composite the
    # dilated border in-kernel (no wrapper concat / repeat).
    ref_up = bilinear_resize(c_match0, big_h, big_w)              # (b,R,H,W)
    mask = 1.0 - v_t
    dilated = lax.reduce_window(mask, -jnp.inf, lax.max,
                                (1, 1, 3, 3), (1, 1, 1, 1), 'SAME')
    border = ((dilated - mask) > 0).astype(jnp.float32)           # (b,1,H,W)

    ref_out = _add_border(ref_up.reshape(b, r_dim, hw2),
                          v_t.reshape(b, 1, hw2),
                          border.reshape(b, 1, hw2),
                          r_dim // 2, budget, cap)
    ref_importance = ref_out.reshape(b, 3, f_dim, big_h, big_w)

    return out_cat, c_mask, ref_importance


# ----------------------------------------------------------------------------
# Pure-JAX reference (mirrors the torch module) for the self-check
# ----------------------------------------------------------------------------
def _reference_forward(c_feats, v_t, v_aligned, normalize=True):
    b, c_c, f_dim, h, w = c_feats.shape
    big_h, big_w = v_t.shape[2], v_t.shape[3]
    r_dim = f_dim - 1
    v_t_res = (bilinear_resize(v_t, h, w) > 0.5).astype(jnp.float32)
    cos, vrm = [], []
    for r in range(r_dim):
        v_r = (bilinear_resize(v_aligned[:, :, r], h, w) > 0.5).astype(jnp.float32)
        vrm.append(v_r)
        vmap = v_t_res * v_r
        v_sum = vmap[:, 0].sum((-1, -2))
        v_zero = (v_sum < 1e-4).astype(jnp.float32)
        v_sum = v_sum + v_zero
        gs_norm = v_sum * c_c if normalize else jnp.ones_like(v_sum)
        gs = (vmap * c_feats[:, :, 0] * c_feats[:, :, r + 1]).sum((-1, -2, -3)) / gs_norm
        gs = gs * (1.0 - v_zero)
        cos.append(jnp.ones((b, c_c, h, w), jnp.float32) * gs.reshape(b, 1, 1, 1))
    cos = jnp.stack(cos, axis=2)
    vrm = jnp.stack(vrm, axis=2)
    masked_vec = cos * vrm
    max_vec = jnp.max(masked_vec, axis=2, keepdims=True)
    masked_exps = jnp.exp(masked_vec - max_vec) * vrm
    masked_sums = masked_exps.sum(2, keepdims=True)
    masked_sums = masked_sums + (masked_sums < 1e-4).astype(jnp.float32)
    c_match = masked_exps / masked_sums
    c_match = c_match * (1.0 - v_t_res)[:, :, None]
    c_out = jnp.sum(c_feats[:, :, 1:] * c_match, axis=2)
    ref_imp = bilinear_resize(c_match[:, 0], big_h, big_w)
    ref_imp = jnp.concatenate(
        [ref_imp[:, :r_dim // 2], v_t, ref_imp[:, r_dim // 2:]], axis=1)
    ref_imp = jnp.tile(ref_imp[:, None], (1, 3, 1, 1, 1))
    mask = 1.0 - v_t
    dil = lax.reduce_window(mask, -jnp.inf, lax.max,
                            (1, 1, 3, 3), (1, 1, 1, 1), 'SAME')
    border = ((dil - mask) > 0).astype(jnp.float32)
    ref_imp = (ref_imp * (1.0 - border[:, :, None]) +
               border[:, :, None] * jnp.array([1., 0., 0.]).reshape(1, 3, 1, 1, 1))
    c_mask = jnp.sum(c_match * vrm, 2)
    c_mask = 1.0 - jnp.mean(c_mask, 1, keepdims=True)
    dec = c_feats[:, :, 0] * v_t_res + c_out
    return jnp.concatenate([dec, c_mask], axis=1), c_mask, ref_imp


# ----------------------------------------------------------------------------
if __name__ == "__main__":
    key = jax.random.PRNGKey(0)
    k1, k2, k3 = jax.random.split(key, 3)

    b, c_c, f, h, w = 2, 4, 4, 16, 16     # feature pyramid level
    H, W = 32, 32                         # full-resolution masks
    R = f - 1

    c_feats = jax.random.normal(k1, (b, c_c, f, h, w), dtype=jnp.float32)
    v_t = (jax.random.uniform(k2, (b, 1, H, W)) > 0.5).astype(jnp.float32)
    v_aligned = (jax.random.uniform(k3, (b, 1, R, H, W)) > 0.5).astype(jnp.float32)

    # Fused (fits-in-VMEM) path.
    fwd = jax.jit(functools.partial(cpn_context_matching, normalize=True))
    out_cat, c_mask, ref_importance = fwd(c_feats, v_t, v_aligned)
    jax.block_until_ready((out_cat, c_mask, ref_importance))

    assert out_cat.shape == (b, c_c + 1, h, w)
    assert c_mask.shape == (b, 1, h, w)
    assert ref_importance.shape == (b, 3, f, H, W)

    ref_cat, ref_mask, ref_imp = _reference_forward(c_feats, v_t, v_aligned, True)
    assert bool(jnp.allclose(out_cat, ref_cat, atol=5e-4, rtol=5e-4))
    assert bool(jnp.allclose(c_mask, ref_mask, atol=5e-4, rtol=5e-4))
    assert bool(jnp.allclose(ref_importance, ref_imp, atol=5e-4, rtol=5e-4))

    # Force the two-pass HW-tiled path (v7x-style tight VMEM budget).
    fwd_tiled = jax.jit(functools.partial(cpn_context_matching, normalize=True,
                                          vmem_budget_bytes=48 * 1024))
    t_cat, t_mask, t_imp = fwd_tiled(c_feats, v_t, v_aligned)
    jax.block_until_ready((t_cat, t_mask, t_imp))
    assert bool(jnp.allclose(t_cat, ref_cat, atol=5e-4, rtol=5e-4))
    assert bool(jnp.allclose(t_mask, ref_mask, atol=5e-4, rtol=5e-4))
    assert bool(jnp.allclose(t_imp, ref_imp, atol=5e-4, rtol=5e-4))

    print("KERNEL_OK")
</pallas_src>

<mosaic_0001>
module attributes {stable_mosaic.version = 11 : i64} {
  func.func @ctx_fused_kernel(%arg0: i32, %arg1: memref<1x4x4x256xf32, #tpu.memory_space<vmem>>, %arg2: memref<1x1x256xf32, #tpu.memory_space<vmem>>, %arg3: memref<1x3x256xf32, #tpu.memory_space<vmem>>, %arg4: memref<1x5x256xf32, #tpu.memory_space<vmem>>, %arg5: memref<1x3x256xf32, #tpu.memory_space<vmem>>) attributes {dimension_semantics = [#tpu.dimension_semantics<parallel>], iteration_bounds = array<i64: 2>, scalar_prefetch = 0 : i64, scratch_operands = 0 : i64, tpu.core_type = #tpu.core_type<tc>, window_params = [{transform_indices = @transform_0, window_bounds = array<i64: 1, 4, 4, 256>}, {transform_indices = @transform_1, window_bounds = array<i64: 1, 1, 256>}, {transform_indices = @transform_2, window_bounds = array<i64: 1, 3, 256>}, {transform_indices = @transform_3, window_bounds = array<i64: 1, 5, 256>}, {transform_indices = @transform_4, window_bounds = array<i64: 1, 3, 256>}]} {
    %c0 = arith.constant 0 : index
    %c0_0 = arith.constant 0 : index
    %c0_1 = arith.constant 0 : index
    %0 = vector.load %arg2[%c0, %c0_0, %c0_1] : memref<1x1x256xf32, #tpu.memory_space<vmem>>, vector<1x1x256xf32>
    %1 = vector.shape_cast %0 : vector<1x1x256xf32> to vector<1x256xf32>
    %c0_2 = arith.constant 0 : index
    %c0_3 = arith.constant 0 : index
    %c0_4 = arith.constant 0 : index
    %2 = vector.load %arg3[%c0_2, %c0_3, %c0_4] : memref<1x3x256xf32, #tpu.memory_space<vmem>>, vector<1x3x256xf32>
    %3 = vector.shape_cast %2 : vector<1x3x256xf32> to vector<3x256xf32>
    %4 = vector.broadcast %1 : vector<1x256xf32> to vector<3x256xf32>
    %5 = arith.mulf %4, %3 : vector<3x256xf32>
    %cst = arith.constant dense<0.000000e+00> : vector<3xf32>
    %6 = vector.multi_reduction <add>, %5, %cst [1] : vector<3x256xf32> to vector<3xf32>
    %7 = vector.shape_cast %6 : vector<3xf32> to vector<3x1xf32>
    %cst_5 = arith.constant 9.99999974E-5 : f32
    %8 = vector.broadcast %cst_5 : f32 to vector<3x1xf32>
    %9 = arith.cmpf olt, %7, %8 : vector<3x1xf32>
    %10 = arith.extui %9 : vector<3x1xi1> to vector<3x1xi32>
    %11 = arith.sitofp %10 : vector<3x1xi32> to vector<3x1xf32>
    %12 = arith.addf %7, %11 : vector<3x1xf32>
    %cst_6 = arith.constant 0.000000e+00 : f32
    %13 = vector.broadcast %cst_6 : f32 to vector<4x256xf32>
    %c0_i32 = arith.constant 0 : i32
    %c4_i32 = arith.constant 4 : i32
    %14 = arith.addi %c0_i32, %c4_i32 : i32
    %c1_i32 = arith.constant 1 : i32
    %15 = scf.for %arg6 = %c0_i32 to %14 step %c1_i32 iter_args(%arg7 = %13) -> (vector<4x256xf32>)  : i32 {
      %c0_26 = arith.constant 0 : index
      %59 = arith.index_cast %arg6 : i32 to index
      %c0_27 = arith.constant 0 : index
      %c0_28 = arith.constant 0 : index
      %60 = vector.load %arg1[%c0_26, %59, %c0_27, %c0_28] : memref<1x4x4x256xf32, #tpu.memory_space<vmem>>, vector<1x1x4x256xf32>
      %61 = vector.shape_cast %60 : vector<1x1x4x256xf32> to vector<4x256xf32>
      %62 = vector.extract_strided_slice %61 {offsets = [0, 0], sizes = [1, 256], strides = [1, 1]} : vector<4x256xf32> to vector<1x256xf32>
      %63 = vector.broadcast %62 : vector<1x256xf32> to vector<4x256xf32>
      %64 = arith.mulf %61, %63 : vector<4x256xf32>
      %65 = arith.addf %arg7, %64 : vector<4x256xf32>
      scf.yield %65 : vector<4x256xf32>
    }
    %c4_i32_7 = arith.constant 4 : i32
    %16 = vector.extract_strided_slice %15 {offsets = [1, 0], sizes = [3, 256], strides = [1, 1]} : vector<4x256xf32> to vector<3x256xf32>
    %17 = arith.mulf %16, %5 : vector<3x256xf32>
    %cst_8 = arith.constant dense<0.000000e+00> : vector<3xf32>
    %18 = vector.multi_reduction <add>, %17, %cst_8 [1] : vector<3x256xf32> to vector<3xf32>
    %19 = vector.shape_cast %18 : vector<3xf32> to vector<3x1xf32>
    %cst_9 = arith.constant 4.000000e+00 : f32
    %20 = vector.broadcast %cst_9 : f32 to vector<3x1xf32>
    %21 = arith.mulf %12, %20 : vector<3x1xf32>
    %22 = arith.divf %19, %21 : vector<3x1xf32>
    %cst_10 = arith.constant 1.000000e+00 : f32
    %23 = vector.broadcast %cst_10 : f32 to vector<3x1xf32>
    %24 = arith.subf %23, %11 : vector<3x1xf32>
    %25 = arith.mulf %22, %24 : vector<3x1xf32>
    %26 = vector.broadcast %25 : vector<3x1xf32> to vector<3x256xf32>
    %27 = arith.mulf %26, %3 : vector<3x256xf32>
    %cst_11 = arith.constant dense<0xFF800000> : vector<256xf32>
    %28 = vector.multi_reduction <maximumf>, %27, %cst_11 [0] : vector<3x256xf32> to vector<256xf32>
    %29 = vector.shape_cast %28 : vector<256xf32> to vector<1x256xf32>
    %30 = vector.broadcast %29 : vector<1x256xf32> to vector<3x256xf32>
    %31 = arith.subf %27, %30 : vector<3x256xf32>
    %32 = math.exp %31 : vector<3x256xf32>
    %33 = arith.mulf %32, %3 : vector<3x256xf32>
    %cst_12 = arith.constant dense<0.000000e+00> : vector<256xf32>
    %34 = vector.multi_reduction <add>, %33, %cst_12 [0] : vector<3x256xf32> to vector<256xf32>
    %35 = vector.shape_cast %34 : vector<256xf32> to vector<1x256xf32>
    %cst_13 = arith.constant 9.99999974E-5 : f32
    %36 = vector.broadcast %cst_13 : f32 to vector<1x256xf32>
    %37 = arith.cmpf olt, %35, %36 : vector<1x256xf32>
    %38 = arith.extui %37 : vector<1x256xi1> to vector<1x256xi32>
    %39 = arith.sitofp %38 : vector<1x256xi32> to vector<1x256xf32>
    %40 = arith.addf %35, %39 : vector<1x256xf32>
    %41 = vector.broadcast %40 : vector<1x256xf32> to vector<3x256xf32>
    %42 = arith.divf %33, %41 : vector<3x256xf32>
    %cst_14 = arith.constant 1.000000e+00 : f32
    %43 = vector.broadcast %cst_14 : f32 to vector<1x256xf32>
    %44 = arith.subf %43, %1 : vector<1x256xf32>
    %45 = vector.broadcast %44 : vector<1x256xf32> to vector<3x256xf32>
    %46 = arith.mulf %42, %45 : vector<3x256xf32>
    %c0_15 = arith.constant 0 : index
    %c0_16 = arith.constant 0 : index
    %c0_17 = arith.constant 0 : index
    %47 = vector.load %arg5[%c0_15, %c0_16, %c0_17] : memref<1x3x256xf32, #tpu.memory_space<vmem>>, vector<1x3x256xf32>
    %48 = vector.shape_cast %47 : vector<1x3x256xf32> to vector<3x256xf32>
    %49 = vector.shape_cast %46 : vector<3x256xf32> to vector<1x3x256xf32>
    tpu.vector_store %arg5[%c0_15, %c0_16, %c0_17], %49 {strides = array<i32>} : memref<1x3x256xf32, #tpu.memory_space<vmem>>, vector<1x3x256xf32>,
    %50 = arith.mulf %46, %3 : vector<3x256xf32>
    %cst_18 = arith.constant dense<0.000000e+00> : vector<256xf32>
    %51 = vector.multi_reduction <add>, %50, %cst_18 [0] : vector<3x256xf32> to vector<256xf32>
    %52 = vector.shape_cast %51 : vector<256xf32> to vector<1x256xf32>
    %cst_19 = arith.constant 1.000000e+00 : f32
    %53 = vector.broadcast %cst_19 : f32 to vector<1x256xf32>
    %54 = arith.subf %53, %52 : vector<1x256xf32>
    %c0_i32_20 = arith.constant 0 : i32
    %c4_i32_21 = arith.constant 4 : i32
    %55 = arith.addi %c0_i32_20, %c4_i32_21 : i32
    %c1_i32_22 = arith.constant 1 : i32
    scf.for %arg6 = %c0_i32_20 to %55 step %c1_i32_22  : i32 {
      %c0_26 = arith.constant 0 : index
      %59 = arith.index_cast %arg6 : i32 to index
      %c0_27 = arith.constant 0 : index
      %c0_28 = arith.constant 0 : index
      %60 = vector.load %arg1[%c0_26, %59, %c0_27, %c0_28] : memref<1x4x4x256xf32, #tpu.memory_space<vmem>>, vector<1x1x4x256xf32>
      %61 = vector.shape_cast %60 : vector<1x1x4x256xf32> to vector<4x256xf32>
      %62 = vector.extract_strided_slice %61 {offsets = [0, 0], sizes = [1, 256], strides = [1, 1]} : vector<4x256xf32> to vector<1x256xf32>
      %63 = arith.mulf %62, %1 : vector<1x256xf32>
      %64 = vector.extract_strided_slice %61 {offsets = [1, 0], sizes = [3, 256], strides = [1, 1]} : vector<4x256xf32> to vector<3x256xf32>
      %65 = arith.mulf %64, %46 : vector<3x256xf32>
      %cst_29 = arith.constant dense<0.000000e+00> : vector<256xf32>
      %66 = vector.multi_reduction <add>, %65, %cst_29 [0] : vector<3x256xf32> to vector<256xf32>
      %67 = vector.shape_cast %66 : vector<256xf32> to vector<1x256xf32>
      %68 = arith.addf %63, %67 : vector<1x256xf32>
      %c0_30 = arith.constant 0 : index
      %69 = arith.index_cast %arg6 : i32 to index
      %c0_31 = arith.constant 0 : index
      %70 = vector.load %arg4[%c0_30, %69, %c0_31] : memref<1x5x256xf32, #tpu.memory_space<vmem>>, vector<1x1x256xf32>
      %71 = vector.shape_cast %70 : vector<1x1x256xf32> to vector<1x256xf32>
      %72 = vector.shape_cast %68 : vector<1x256xf32> to vector<1x1x256xf32>
      tpu.vector_store %arg4[%c0_30, %69, %c0_31], %72 {strides = array<i32>} : memref<1x5x256xf32, #tpu.memory_space<vmem>>, vector<1x1x256xf32>,
    }
    %c4_i32_23 = arith.constant 4 : i32
    %c0_24 = arith.constant 0 : index
    %c4 = arith.constant 4 : index
    %c0_25 = arith.constant 0 : index
    %56 = vector.load %arg4[%c0_24, %c4, %c0_25] : memref<1x5x256xf32, #tpu.memory_space<vmem>>, vector<1x1x256xf32>
    %57 = vector.shape_cast %56 : vector<1x1x256xf32> to vector<1x256xf32>
    %58 = vector.shape_cast %54 : vector<1x256xf32> to vector<1x1x256xf32>
    tpu.vector_store %arg4[%c0_24, %c4, %c0_25], %58 {strides = array<i32>} : memref<1x5x256xf32, #tpu.memory_space<vmem>>, vector<1x1x256xf32>,
    return
  }
  func.func @transform_0(%arg0: i32) -> (i32, i32, i32, i32) {
    %c0_i32 = arith.constant 0 : i32
    %c0_i32_0 = arith.constant 0 : i32
    %c0_i32_1 = arith.constant 0 : i32
    %c0_i32_2 = arith.constant 0 : i32
    return %arg0, %c0_i32, %c0_i32_0, %c0_i32_1 : i32, i32, i32, i32
  }
  func.func @transform_1(%arg0: i32) -> (i32, i32, i32) {
    %c0_i32 = arith.constant 0 : i32
    %c0_i32_0 = arith.constant 0 : i32
    %c0_i32_1 = arith.constant 0 : i32
    return %arg0, %c0_i32, %c0_i32_0 : i32, i32, i32
  }
  func.func @transform_2(%arg0: i32) -> (i32, i32, i32) {
    %c0_i32 = arith.constant 0 : i32
    %c0_i32_0 = arith.constant 0 : i32
    %c0_i32_1 = arith.constant 0 : i32
    return %arg0, %c0_i32, %c0_i32_0 : i32, i32, i32
  }
  func.func @transform_3(%arg0: i32) -> (i32, i32, i32) {
    %c0_i32 = arith.constant 0 : i32
    %c0_i32_0 = arith.constant 0 : i32
    %c0_i32_1 = arith.constant 0 : i32
    return %arg0, %c0_i32, %c0_i32_0 : i32, i32, i32
  }
  func.func @transform_4(%arg0: i32) -> (i32, i32, i32) {
    %c0_i32 = arith.constant 0 : i32
    %c0_i32_0 = arith.constant 0 : i32
    %c0_i32_1 = arith.constant 0 : i32
    return %arg0, %c0_i32, %c0_i32_0 : i32, i32, i32
  }
}

module attributes {stable_mosaic.version = 11 : i64} {
  func.func @add_border_kernel(%arg0: i32, %arg1: i32, %arg2: memref<1x3x1024xf32, #tpu.memory_space<vmem>>, %arg3: memref<1x1x1024xf32, #tpu.memory_space<vmem>>, %arg4: memref<1x1x1024xf32, #tpu.memory_space<vmem>>, %arg5: memref<1x3x4x1024xf32, #tpu.memory_space<vmem>>) attributes {dimension_semantics = [#tpu.dimension_semantics<parallel>, #tpu.dimension_semantics<parallel>], iteration_bounds = array<i64: 2, 1>, scalar_prefetch = 0 : i64, scratch_operands = 0 : i64, tpu.core_type = #tpu.core_type<tc>, window_params = [{transform_indices = @transform_0, window_bounds = array<i64: 1, 3, 1024>}, {transform_indices = @transform_1, window_bounds = array<i64: 1, 1, 1024>}, {transform_indices = @transform_2, window_bounds = array<i64: 1, 1, 1024>}, {transform_indices = @transform_3, window_bounds = array<i64: 1, 3, 4, 1024>}]} {
    %c0 = arith.constant 0 : index
    %c0_0 = arith.constant 0 : index
    %c0_1 = arith.constant 0 : index
    %0 = vector.load %arg2[%c0, %c0_0, %c0_1] : memref<1x3x1024xf32, #tpu.memory_space<vmem>>, vector<1x3x1024xf32>
    %1 = vector.shape_cast %0 : vector<1x3x1024xf32> to vector<3x1024xf32>
    %c0_2 = arith.constant 0 : index
    %c0_3 = arith.constant 0 : index
    %c0_4 = arith.constant 0 : index
    %2 = vector.load %arg3[%c0_2, %c0_3, %c0_4] : memref<1x1x1024xf32, #tpu.memory_space<vmem>>, vector<1x1x1024xf32>
    %3 = vector.shape_cast %2 : vector<1x1x1024xf32> to vector<1x1024xf32>
    %c0_5 = arith.constant 0 : index
    %c0_6 = arith.constant 0 : index
    %c0_7 = arith.constant 0 : index
    %4 = vector.load %arg4[%c0_5, %c0_6, %c0_7] : memref<1x1x1024xf32, #tpu.memory_space<vmem>>, vector<1x1x1024xf32>
    %5 = vector.shape_cast %4 : vector<1x1x1024xf32> to vector<1x1024xf32>
    %6 = vector.extract_strided_slice %1 {offsets = [0, 0], sizes = [1, 1024], strides = [1, 1]} : vector<3x1024xf32> to vector<1x1024xf32>
    %7 = vector.extract_strided_slice %1 {offsets = [1, 0], sizes = [2, 1024], strides = [1, 1]} : vector<3x1024xf32> to vector<2x1024xf32>
    %8 = tpu.concatenate %6, %3, %7 in 0 : vector<1x1024xf32>, vector<1x1024xf32>, vector<2x1024xf32> -> vector<4x1024xf32>
    %cst = arith.constant 1.000000e+00 : f32
    %9 = vector.broadcast %cst : f32 to vector<1x1024xf32>
    %10 = arith.subf %9, %5 : vector<1x1024xf32>
    %11 = vector.broadcast %10 : vector<1x1024xf32> to vector<4x1024xf32>
    %12 = arith.mulf %8, %11 : vector<4x1024xf32>
    %13 = vector.broadcast %5 : vector<1x1024xf32> to vector<4x1024xf32>
    %14 = arith.addf %12, %13 : vector<4x1024xf32>
    %c0_8 = arith.constant 0 : index
    %c0_9 = arith.constant 0 : index
    %c0_10 = arith.constant 0 : index
    %c0_11 = arith.constant 0 : index
    %15 = vector.load %arg5[%c0_8, %c0_9, %c0_10, %c0_11] : memref<1x3x4x1024xf32, #tpu.memory_space<vmem>>, vector<1x1x4x1024xf32>
    %16 = vector.shape_cast %15 : vector<1x1x4x1024xf32> to vector<4x1024xf32>
    %17 = vector.shape_cast %14 : vector<4x1024xf32> to vector<1x1x4x1024xf32>
    tpu.vector_store %arg5[%c0_8, %c0_9, %c0_10, %c0_11], %17 {strides = array<i32>} : memref<1x3x4x1024xf32, #tpu.memory_space<vmem>>, vector<1x1x4x1024xf32>,
    %c0_12 = arith.constant 0 : index
    %c1 = arith.constant 1 : index
    %c0_13 = arith.constant 0 : index
    %c0_14 = arith.constant 0 : index
    %18 = vector.load %arg5[%c0_12, %c1, %c0_13, %c0_14] : memref<1x3x4x1024xf32, #tpu.memory_space<vmem>>, vector<1x1x4x1024xf32>
    %19 = vector.shape_cast %18 : vector<1x1x4x1024xf32> to vector<4x1024xf32>
    %20 = vector.shape_cast %12 : vector<4x1024xf32> to vector<1x1x4x1024xf32>
    tpu.vector_store %arg5[%c0_12, %c1, %c0_13, %c0_14], %20 {strides = array<i32>} : memref<1x3x4x1024xf32, #tpu.memory_space<vmem>>, vector<1x1x4x1024xf32>,
    %c0_15 = arith.constant 0 : index
    %c2 = arith.constant 2 : index
    %c0_16 = arith.constant 0 : index
    %c0_17 = arith.constant 0 : index
    %21 = vector.load %arg5[%c0_15, %c2, %c0_16, %c0_17] : memref<1x3x4x1024xf32, #tpu.memory_space<vmem>>, vector<1x1x4x1024xf32>
    %22 = vector.shape_cast %21 : vector<1x1x4x1024xf32> to vector<4x1024xf32>
    %23 = vector.shape_cast %12 : vector<4x1024xf32> to vector<1x1x4x1024xf32>
    tpu.vector_store %arg5[%c0_15, %c2, %c0_16, %c0_17], %23 {strides = array<i32>} : memref<1x3x4x1024xf32, #tpu.memory_space<vmem>>, vector<1x1x4x1024xf32>,
    return
  }
  func.func @transform_0(%arg0: i32, %arg1: i32) -> (i32, i32, i32) {
    %c0_i32 = arith.constant 0 : i32
    %c0_i32_0 = arith.constant 0 : i32
    return %arg0, %c0_i32, %arg1 : i32, i32, i32
  }
  func.func @transform_1(%arg0: i32, %arg1: i32) -> (i32, i32, i32) {
    %c0_i32 = arith.constant 0 : i32
    %c0_i32_0 = arith.constant 0 : i32
    return %arg0, %c0_i32, %arg1 : i32, i32, i32
  }
  func.func @transform_2(%arg0: i32, %arg1: i32) -> (i32, i32, i32) {
    %c0_i32 = arith.constant 0 : i32
    %c0_i32_0 = arith.constant 0 : i32
    return %arg0, %c0_i32, %arg1 : i32, i32, i32
  }
  func.func @transform_3(%arg0: i32, %arg1: i32) -> (i32, i32, i32, i32) {
    %c0_i32 = arith.constant 0 : i32
    %c0_i32_0 = arith.constant 0 : i32
    %c0_i32_1 = arith.constant 0 : i32
    return %arg0, %c0_i32, %c0_i32_0, %arg1 : i32, i32, i32, i32
  }
}

</mosaic_0001>

<llo_original>
// kernel: cpn_context_matching.2
$region0: #{cpn_context_matching.2}
  #allocation0 [shape = 'u32[]', space=smem, size = 0x4, offset = 0x4, fixed_abs, tag = 'smem constant byte address 0x4 - core index']
  #allocation1 [shape = 'u32[144,128]{1,0:T(1,128)}', space=vmem, size = 0x12000, scoped, tag = 'internal scratch']
  %s0 = inlined_call_operand.vmem [shape: f32[2,4,4,256], index: 0, kind: input, shape index: {}]
  %s1 = inlined_call_operand.vmem [shape: f32[2,1,256], index: 1, kind: input, shape index: {}]
  %s2 = inlined_call_operand.vmem [shape: f32[2,3,256], index: 2, kind: input, shape index: {}]
  %s3 = inlined_call_operand.vmem [shape: f32[2,5,256], index: 3, kind: output, shape index: {0}]
  %s4 = inlined_call_operand.vmem [shape: f32[2,3,256], index: 4, kind: output, shape index: {1}]
  %5 = xla_tuple %s3, %s4
  %s6 = sld [smem:[#allocation0]]
  $region67: #{cpn_context_matching.2} parent=0
    _
  %s8 = ssub.s32 1, %s6
  %s9 = scalar_select 0, %s8, %s6
  loop: start=0, step=1, limit=4
  $region2: #{cpn_context_matching.2} parent=0 // loop_pre_header
    _
  $region3: #{cpn_context_matching.2} parent=0 // loop_header
    %s11 = sphi 0, %s15
    %p12 = scmp.ge.s32.totalorder %s11, 4
    %s21 = sphi 0, %s23
    %s24 = sphi 0, %s21
    %s25 = sphi 0, %s24
    %s41 = sphi 0, %s25
    %s47 = sphi 0, %s49
    %s50 = sphi 0, %s47
    %s51 = sphi 0, %s50
    %s67 = sphi 0, %s51
    %s73 = sphi 0, %s75
    %s76 = sphi 0, %s73
    %s77 = sphi 0, %s76
    %s93 = sphi 0, %s77
    %s99 = sphi 0, %s101
    %s102 = sphi 0, %s99
    %s103 = sphi 0, %s102
    %s119 = sphi 0, %s103
    %s125 = sphi 0, %s127
    %s128 = sphi 0, %s125
    %s129 = sphi 0, %s128
    %s145 = sphi 0, %s129
  $region4: #{cpn_context_matching.2} parent=0 // loop_header_branch
    %14 = sbr.rel (%p12) target = $region8
  $region5: #{cpn_context_matching.2} parent=0 // loop_body
    %s16 = ssub.s32 %s11, 1
    %s17 = ssub.s32 %s11, 2
    %s18 = sadd.s32 %s11, 1
    %s19 = ssub.s32 %s11, %s18
    %p20 = scmp.eq.s32.totalorder %s19, 0
    %s22 = sadd.s32 %s21, 1
    %s23 = scalar_select %p20, %s21, %s22
    %p26 = pneg %p20
    %p27 = scmp.eq.s32.totalorder %s11, 1
    %p28 = por %p26, %p27
    %p29 = scmp.ne.s32.totalorder %s21, %s24
    %p30 = scmp.eq.s32.totalorder %s11, 0
    %p31 = por %p29, %p30
    %p32 = scmp.ne.s32.totalorder %s21, %s24
    %p33 = scmp.eq.s32.totalorder %s16, 1
    %p34 = por %p32, %p33
    %p35 = scmp.ne.s32.totalorder %s24, %s25
    %p36 = scmp.eq.s32.totalorder %s16, 0
    %p37 = por %p35, %p36
    %p38 = scmp.ne.s32.totalorder %s24, %s25
    %p39 = scmp.eq.s32.totalorder %s17, 1
    %p40 = por %p38, %p39
    %p42 = scmp.ne.s32.totalorder %s25, %s41
    %p43 = scmp.eq.s32.totalorder %s17, 0
    %p44 = por %p42, %p43
    %s45 = ssub.s32 %s11, %s18
    %p46 = scmp.eq.s32.totalorder %s45, 0
    %s48 = sadd.s32 %s47, 1
    %s49 = scalar_select %p46, %s47, %s48
    %p52 = pneg %p46
    %p53 = scmp.eq.s32.totalorder %s11, 1
    %p54 = por %p52, %p53
    %p55 = scmp.ne.s32.totalorder %s47, %s50
    %p56 = scmp.eq.s32.totalorder %s11, 0
    %p57 = por %p55, %p56
    %p58 = scmp.ne.s32.totalorder %s47, %s50
    %p59 = scmp.eq.s32.totalorder %s16, 1
    %p60 = por %p58, %p59
    %p61 = scmp.ne.s32.totalorder %s50, %s51
    %p62 = scmp.eq.s32.totalorder %s16, 0
    %p63 = por %p61, %p62
    %p64 = scmp.ne.s32.totalorder %s50, %s51
    %p65 = scmp.eq.s32.totalorder %s17, 1
    %p66 = por %p64, %p65
    %p68 = scmp.ne.s32.totalorder %s51, %s67
    %p69 = scmp.eq.s32.totalorder %s17, 0
    %p70 = por %p68, %p69
    %s71 = ssub.s32 %s11, %s18
    %p72 = scmp.eq.s32.totalorder %s71, 0
    %s74 = sadd.s32 %s73, 1
    %s75 = scalar_select %p72, %s73, %s74
    %p78 = pneg %p72
    %p79 = scmp.eq.s32.totalorder %s11, 1
    %p80 = por %p78, %p79
    %p81 = scmp.ne.s32.totalorder %s73, %s76
    %p82 = scmp.eq.s32.totalorder %s11, 0
    %p83 = por %p81, %p82
    %p84 = scmp.ne.s32.totalorder %s73, %s76
    %p85 = scmp.eq.s32.totalorder %s16, 1
    %p86 = por %p84, %p85
    %p87 = scmp.ne.s32.totalorder %s76, %s77
    %p88 = scmp.eq.s32.totalorder %s16, 0
    %p89 = por %p87, %p88
    %p90 = scmp.ne.s32.totalorder %s76, %s77
    %p91 = scmp.eq.s32.totalorder %s17, 1
    %p92 = por %p90, %p91
    %p94 = scmp.ne.s32.totalorder %s77, %s93
    %p95 = scmp.eq.s32.totalorder %s17, 0
    %p96 = por %p94, %p95
    %s97 = ssub.s32 %s11, %s18
    %p98 = scmp.eq.s32.totalorder %s97, 0
    %s100 = sadd.s32 %s99, 1
    %s101 = scalar_select %p98, %s99, %s100
    %p104 = pneg %p98
    %p105 = scmp.eq.s32.totalorder %s11, 1
    %p106 = por %p104, %p105
    %p107 = scmp.ne.s32.totalorder %s99, %s102
    %p108 = scmp.eq.s32.totalorder %s11, 0
    %p109 = por %p107, %p108
    %p110 = scmp.ne.s32.totalorder %s99, %s102
    %p111 = scmp.eq.s32.totalorder %s16, 1
    %p112 = por %p110, %p111
    %p113 = scmp.ne.s32.totalorder %s102, %s103
    %p114 = scmp.eq.s32.totalorder %s16, 0
    %p115 = por %p113, %p114
    %p116 = scmp.ne.s32.totalorder %s102, %s103
    %p117 = scmp.eq.s32.totalorder %s17, 1
    %p118 = por %p116, %p117
    %p120 = scmp.ne.s32.totalorder %s103, %s119
    %p121 = scmp.eq.s32.totalorder %s17, 0
    %p122 = por %p120, %p121
    %s123 = ssub.s32 %s11, %s18
    %p124 = scmp.eq.s32.totalorder %s123, 0
    %s126 = sadd.s32 %s125, 1
    %s127 = scalar_select %p124, %s125, %s126
    %p130 = pneg %p124
    %p131 = scmp.eq.s32.totalorder %s11, 1
    %p132 = por %p130, %p131
    %p133 = scmp.ne.s32.totalorder %s125, %s128
    %p134 = scmp.eq.s32.totalorder %s11, 0
    %p135 = por %p133, %p134
    %p136 = scmp.ne.s32.totalorder %s125, %s128
    %p137 = scmp.eq.s32.totalorder %s16, 1
    %p138 = por %p136, %p137
    %p139 = scmp.ne.s32.totalorder %s128, %s129
    %p140 = scmp.eq.s32.totalorder %s16, 0
    %p141 = por %p139, %p140
    %p142 = scmp.ne.s32.totalorder %s128, %s129
    %p143 = scmp.eq.s32.totalorder %s17, 1
    %p144 = por %p142, %p143
    %p146 = scmp.ne.s32.totalorder %s129, %s145
    %p147 = scmp.eq.s32.totalorder %s17, 0
    %p148 = por %p146, %p147
    %p149 = scmp.le.s32.totalorder 1, %s11
    %p150 = scmp.lt.s32.totalorder %s11, 3
    %p151 = pnand %p149, %p150
    %p152 = pneg %p151
    // Predicated region
    $region9: #{cpn_context_matching.2} parent=5 // pred_check
      _
    $region10: #{cpn_context_matching.2} parent=5 // pred_check_branch
      %154 = sbr.rel (%p151) target = $region12
    $region11: #{cpn_context_matching.2} parent=5 // pred_region
      %s155 = ssub.s32 %s11, 1
    $region12: #{cpn_context_matching.2} parent=5 // pred_fallthru
      _
    %p156 = scmp.lt.s32.totalorder %s11, 2
    // Predicated region
    $region13: #{cpn_context_matching.2} parent=5 // pred_check
      %p157 = pneg %p156
    $region14: #{cpn_context_matching.2} parent=5 // pred_check_branch
      %159 = sbr.rel (%p157) target = $region16
    $region15: #{cpn_context_matching.2} parent=5 // pred_region
      // Predicated region
      $region17: #{cpn_context_matching.2} parent=15 // pred_check
        %p160 = pneg %p31
      $region18: #{cpn_context_matching.2} parent=15 // pred_check_branch
        %162 = sbr.rel (%p160) target = $region20
      $region19: #{cpn_context_matching.2} parent=15 // pred_region
        %p163 = scmp.lt.s32.totalorder %s11, 1
        %s164 = scalar_select %p163, %s11, 1
        %s165 = smul.addr %s164, 8
        %s166 = smul.addr %s165, 4
        %s167 = scalar_lea.vmem %s0, %s166
      $region20: #{cpn_context_matching.2} parent=15 // pred_fallthru
        _
      // Predicated region
      $region21: #{cpn_context_matching.2} parent=15 // pred_check
        %p168 = pneg %p57
      $region22: #{cpn_context_matching.2} parent=15 // pred_check_branch
        %170 = sbr.rel (%p168) target = $region24
      $region23: #{cpn_context_matching.2} parent=15 // pred_region
        %p171 = scmp.lt.s32.totalorder %s11, 1
        %s172 = scalar_select %p171, %s11, 1
        %s173 = smul.addr %s172, 2
        %s174 = scalar_lea.vmem %s1, %s173
      $region24: #{cpn_context_matching.2} parent=15 // pred_fallthru
        _
      // Predicated region
      $region25: #{cpn_context_matching.2} parent=15 // pred_check
        %p175 = pneg %p83
      $region26: #{cpn_context_matching.2} parent=15 // pred_check_branch
        %177 = sbr.rel (%p175) target = $region28
      $region27: #{cpn_context_matching.2} parent=15 // pred_region
        %p178 = scmp.lt.s32.totalorder %s11, 1
        %s179 = scalar_select %p178, %s11, 1
        %s180 = smul.addr %s179, 2
        %s181 = smul.addr %s180, 4
        %s182 = scalar_lea.vmem %s2, %s181
      $region28: #{cpn_context_matching.2} parent=15 // pred_fallthru
        _
    $region16: #{cpn_context_matching.2} parent=5 // pred_fallthru
      _
    %p183 = scmp.le.s32.totalorder 1, %s11
    %p184 = scmp.lt.s32.totalorder %s11, 3
    %p185 = pnand %p183, %p184
    %p186 = pneg %p185
    // Predicated region
    $region29: #{cpn_context_matching.2} parent=5 // pred_check
      _
    $region30: #{cpn_context_matching.2} parent=5 // pred_check_branch
      %188 = sbr.rel (%p185) target = $region32
    $region31: #{cpn_context_matching.2} parent=5 // pred_region
      %s189 = ssub.s32 %s11, 1
      %p190 = scmp.lt.s32.totalorder %s16, 1
      %s191 = scalar_select %p190, %s16, 1
      %s192 = smul.addr %s191, 8
      %s193 = smul.addr %s192, 4
      %s194 = scalar_lea.vmem %s0, %s193
      %p195 = pneg %p37
      %p196 = pneg %p34
      %p197 = scmp.lt.s32.totalorder %s16, 1
      %s198 = scalar_select %p197, %s16, 1
      %s199 = smul.addr %s198, 2
      %s200 = scalar_lea.vmem %s1, %s199
      %p201 = pneg %p63
      %p202 = pneg %p60
      %p203 = scmp.lt.s32.totalorder %s16, 1
      %s204 = scalar_select %p203, %s16, 1
      %s205 = smul.addr %s204, 2
      %s206 = smul.addr %s205, 4
      %s207 = scalar_lea.vmem %s2, %s206
      %p208 = pneg %p89
      %p209 = pneg %p86
      %p210 = pneg %p115
      %p211 = pneg %p112
      %p212 = scmp.lt.s32.totalorder %s16, 1
      %s213 = scalar_select %p212, %s16, 1
      %s214 = smul.addr %s213, 2
      %s215 = smul.addr %s214, 8
      %s216 = scalar_lea.vmem %s3, %s215
      %p217 = pneg %p141
      %p218 = pneg %p138
      %p219 = scmp.lt.s32.totalorder %s16, 1
      %s220 = scalar_select %p219, %s16, 1
      %s221 = smul.addr %s220, 2
      %s222 = smul.addr %s221, 4
      %s223 = scalar_lea.vmem %s4, %s222
      %p224 = scmp.lt.s32.totalorder %s16, 1
      %s225 = scalar_select %p224, %s16, 1
      %s226 = smul.addr %s225, 8
      %s227 = smul.addr %s226, 4
      %s228 = scalar_lea.vmem %s0, %s227
      %p229 = scmp.lt.s32.totalorder %s16, 1
      %s230 = scalar_select %p229, %s16, 1
      %s231 = smul.addr %s230, 2
      %s232 = scalar_lea.vmem %s1, %s231
      %p233 = scmp.lt.s32.totalorder %s16, 1
      %s234 = scalar_select %p233, %s16, 1
      %s235 = smul.addr %s234, 2
      %s236 = smul.addr %s235, 4
      %s237 = scalar_lea.vmem %s2, %s236
      %p238 = scmp.lt.s32.totalorder %s16, 1
      %s239 = scalar_select %p238, %s16, 1
      %s240 = smul.addr %s239, 2
      %s241 = smul.addr %s240, 8
      %s242 = scalar_lea.vmem %s3, %s241
      %p243 = scmp.lt.s32.totalorder %s16, 1
      %s244 = scalar_select %p243, %s16, 1
      %s245 = smul.addr %s244, 2
      %s246 = smul.addr %s245, 4
      %s247 = scalar_lea.vmem %s4, %s246
      %v248 = vld [vmem:[%s232] sm:$0x3]
      %v249 = vld [vmem:[%s237] sm:$0x77]
      %v251 = vlaneseq
      %v252 = vshrl.u32 %v251, 7
      %v253 = vsub.s32 0, %v252
      %v254 = vrot.slane %v248, %v253
      %v255 = vlaneseq
      %v256 = vshrl.u32 %v255, 7
      %v257 = vsub.s32 1, %v256
      %v258 = vrot.slane %v248, %v257
      %v262 = vcombine.high %v249, %v249
      %v264 = vmul.f32 %v254, %v249
      %v265 = vmul.f32 %v258, %v262
      %vm266 = vcmask 1042432
      %v267 = vsel %vm266, %v264, 0.0
      %v268 = vsel %vm266, %v265, 0.0
      %v269 = vadd.f32 %v267, %v268
      %270 = vadd.xlane.f32.xlu0 %v269
      %v271 = vpop.xlane.xlu0 %270
      %vm272 = vcmp.lt.f32.partialorder %v271, 0.0001
      %v273 = vsel %vm272, 1, 0
      %v274 = vcvt.s32.f32 %v273
      %v275 = vadd.f32 %v271, %v274
      loop: start=0, step=1, limit=4
      $region33: #{cpn_context_matching.2} parent=31 // loop_pre_header
        _
      $region34: #{cpn_context_matching.2} parent=31 // loop_header
        %s277 = sphi 0, %s281
        %p278 = scmp.ge.s32.totalorder %s277, 4
        %v282 = vphi 0.0, %v311
      $region35: #{cpn_context_matching.2} parent=31 // loop_header_branch
        %280 = sbr.rel (%p278) target = $region39
      $region36: #{cpn_context_matching.2} parent=31 // loop_body
        %s283 = smul.u32 %s277, 2
        %s284 = smul.addr %s283, 4
        %s285 = scalar_lea.vmem %s228, %s284
        %v286 = vld [vmem:[%s285] sm:$0xff]
        %v288 = vlaneseq
        %v289 = vshrl.u32 %v288, 7
        %v290 = vsub.s32 0, %v289
        %v291 = vrot.slane %v286, %v290
        %v292 = vlaneseq
        %v293 = vshrl.u32 %v292, 7
        %v294 = vsub.s32 4, %v293
        %v295 = vrot.slane %v286, %v294
        %v298 = vlaneseq
        %v299 = vshrl.u32 %v298, 7
        %v300 = vsub.s32 0, %v299
        %v301 = vrot.slane %v291, %v300
        %v302 = vlaneseq
        %v303 = vshrl.u32 %v302, 7
        %v304 = vsub.s32 0, %v303
        %v305 = vrot.slane %v295, %v304
        %v308 = vcombine.low %v301, %v305
        %v310 = vmul.f32 %v286, %v308
        %v311 = vadd.f32 %v282, %v310
      $region37: #{cpn_context_matching.2} parent=31 // loop_footer
        %s281 = sadd.s32 1, %s277
      $region38: #{cpn_context_matching.2} parent=31 // loop_footer_branch
        %276 = sbr.rel target = $region34
      $region39: #{cpn_context_matching.2} parent=31 // loop_exit
        _
      %v314 = vcombine.low %v264, %v265
      %v315 = vrot.slane %v314, 7
      %v317 = vmul.f32 %v282, %v315
      %v319 = vcombine.high %v317, %v317
      %vm321 = vcmask 1043457
      %v322 = vsel %vm321, %v317, 0.0
      %v323 = vsel %vm321, %v319, 0.0
      %v324 = vadd.f32 %v322, %v323
      %325 = vadd.xlane.f32.xlu0 %v324
      %v326 = vpop.xlane.xlu0 %325
      %v327 = vmul.f32 %v275, 4.0
      %v329 = vrot.slane %v327, 7
      %v331 = vrcp.pop %v329
      %v332 = vmul.f32 %v326, %v331
      %v333 = vsub.f32 1.0, %v274
      %v335 = vrot.slane %v333, 7
      %v337 = vmul.f32 %v332, %v335
      %339 = vset.pattern.permute.xlu0 0
      %340 = vperm.xlu0 %339, %v337
      %v341 = vpop.permute.xlu0 %340
      %v343 = vrot.slane %v249, 7
      %v344 = vrot.slane %v262, 7
      %v347 = vmul.f32 %v341, %v343
      %v348 = vmul.f32 %v341, %v344
      %v349 = vsel %vm321, %v347, -inf
      %v350 = vrot.slane %v349, 4
      %v351 = vmax.f32 %v349, %v350
      %v352 = vrot.slane %v351, 2
      %v353 = vmax.f32 %v351, %v352
      %v354 = vrot.slane %v353, 1
      %v355 = vmax.f32 %v353, %v354
      %v356 = vsel %vm321, %v348, -inf
      %v357 = vrot.slane %v356, 4
      %v358 = vmax.f32 %v356, %v357
      %v359 = vrot.slane %v358, 2
      %v360 = vmax.f32 %v358, %v359
      %v361 = vrot.slane %v360, 1
      %v362 = vmax.f32 %v360, %v361
      %v363 = vsub.f32 %v347, %v355
      %v364 = vsub.f32 %v348, %v362
      %v365 = vmul.f32 %v363, 1.442695
      %v366 = vpow.pop %v365
      %v367 = vmul.f32 %v364, 1.442695
      %v368 = vpow.pop %v367
      %v369 = vmul.f32 %v366, %v343
      %v370 = vmul.f32 %v368, %v344
      %v373 = vrot.slane %v369, 1
      %v374 = vrot.slane %v370, 1
      %v377 = vsel %vm266, %v373, 0.0
      %v378 = vrot.slane %v377, 4
      %v379 = vadd.f32 %v377, %v378
      %v380 = vrot.slane %v379, 2
      %v381 = vadd.f32 %v379, %v380
      %v382 = vrot.slane %v381, 1
      %v383 = vadd.f32 %v381, %v382
      %v384 = vsel %vm266, %v374, 0.0
      %v385 = vrot.slane %v384, 4
      %v386 = vadd.f32 %v384, %v385
      %v387 = vrot.slane %v386, 2
      %v388 = vadd.f32 %v386, %v387
      %v389 = vrot.slane %v388, 1
      %v390 = vadd.f32 %v388, %v389
      %vm391 = vcmp.lt.f32.partialorder %v383, 0.0001
      %vm392 = vcmp.lt.f32.partialorder %v390, 0.0001
      %v393 = vsel %vm391, 1, 0
      %v394 = vsel %vm392, 1, 0
      %v395 = vcvt.s32.f32 %v393
      %v396 = vcvt.s32.f32 %v394
      %v397 = vadd.f32 %v383, %v395
      %v398 = vadd.f32 %v390, %v396
      %v399 = vrcp.pop %v397
      %v400 = vmul.f32 %v369, %v399
      %v401 = vrcp.pop %v398
      %v402 = vmul.f32 %v370, %v401
      %v403 = vsub.f32 1.0, %v248
      %v405 = vlaneseq
      %v406 = vshrl.u32 %v405, 7
      %v407 = vsub.s32 0, %v406
      %v408 = vrot.slane %v403, %v407
      %v409 = vlaneseq
      %v410 = vshrl.u32 %v409, 7
      %v411 = vsub.s32 1, %v410
      %v412 = vrot.slane %v403, %v411
      %v415 = vmul.f32 %v400, %v408
      %v416 = vmul.f32 %v402, %v412
      %v419 = vcombine.low %v415, %v416
      %v420 = vrot.slane %v419, 5
      %v421 = vrot.slane %v420, 4
      %423 = vst [vmem:[%s247] sm:$0x77] %v421
      %v424 = vmul.f32 %v415, %v343
      %v425 = vmul.f32 %v416, %v344
      %v428 = vrot.slane %v424, 1
      %v429 = vrot.slane %v425, 1
      %v432 = vsel %vm266, %v428, 0.0
      %v433 = vrot.slane %v432, 4
      %v434 = vadd.f32 %v432, %v433
      %v435 = vrot.slane %v434, 2
      %v436 = vadd.f32 %v434, %v435
      %v437 = vrot.slane %v436, 1
      %v438 = vadd.f32 %v436, %v437
      %v439 = vsel %vm266, %v429, 0.0
      %v440 = vrot.slane %v439, 4
      %v441 = vadd.f32 %v439, %v440
      %v442 = vrot.slane %v441, 2
      %v443 = vadd.f32 %v441, %v442
      %v444 = vrot.slane %v443, 1
      %v445 = vadd.f32 %v443, %v444
      %v446 = vsub.f32 1.0, %v438
      %v447 = vsub.f32 1.0, %v445
      loop: start=0, step=1, limit=4
      $region40: #{cpn_context_matching.2} parent=31 // loop_pre_header
        _
      $region41: #{cpn_context_matching.2} parent=31 // loop_header
        %s449 = sphi 0, %s453
        %p450 = scmp.ge.s32.totalorder %s449, 4
      $region42: #{cpn_context_matching.2} parent=31 // loop_header_branch
        %452 = sbr.rel (%p450) target = $region46
      $region43: #{cpn_context_matching.2} parent=31 // loop_body
        %s454 = smul.u32 %s449, 2
        %s455 = smul.addr %s454, 4
        %s456 = scalar_lea.vmem %s228, %s455
        %v457 = vld [vmem:[%s456] sm:$0xff]
        %v459 = vunpack.c.l.s4 286326784
        %v460 = vunpack.c.0.s8 %v459
        %v461 = vlaneseq
        %v462 = vshrl.u32 %v461, 7
        %v463 = vsub.s32 %v460, %v462
        %v464 = vrot.slane %v248, %v463
        %v466 = vmul.f32 %v457, %v464
        %v468 = vmul.f32 %v457, %v419
        %v470 = vcombine.high %v468, %v468
        %v471 = vrot.slane %v468, 1
        %v472 = vrot.slane %v470, 1
        %v475 = vsel %vm266, %v471, 0.0
        %v476 = vrot.slane %v475, 4
        %v477 = vadd.f32 %v475, %v476
        %v478 = vrot.slane %v477, 2
        %v479 = vadd.f32 %v477, %v478
        %v480 = vrot.slane %v479, 1
        %v481 = vadd.f32 %v479, %v480
        %v482 = vsel %vm266, %v472, 0.0
        %v483 = vrot.slane %v482, 4
        %v484 = vadd.f32 %v482, %v483
        %v485 = vrot.slane %v484, 2
        %v486 = vadd.f32 %v484, %v485
        %v487 = vrot.slane %v486, 1
        %v488 = vadd.f32 %v486, %v487
        %v491 = vcombine.low %v481, %v488
        %v493 = vadd.f32 %v466, %v491
        %v496 = vunpack.c.l.s4 1966171168
        %v497 = vunpack.c.0.s8 %v496
        %v498 = vlaneseq
        %v499 = vshrl.u32 %v498, 7
        %v500 = vsub.s32 %v497, %v499
        %v501 = vrot.slane %v493, %v500
        %v503 = vunpack.c.l.s4 1966171168
        %v504 = vunpack.c.0.s8 %v503
        %v505 = vlaneseq
        %v506 = vshrl.u32 %v505, 7
        %v507 = vsub.s32 %v504, %v506
        %v508 = vrot.slane %v501, %v507
        %v510 = vlaneseq
        %vm511 = vcmp.ge.s32.totalorder %v510, 0
        %vm512 = vcmp.lt.s32.totalorder %v510, 256
        %vm513 = vmand %vm511, %vm512
        %s514 = sshra.s32 %s449, 3
        %s515 = sand.u32 %s449, 7
        %s516 = sshra.s32 %s449, 3
        %s517 = sand.u32 %s449, 7
        %s518 = smul.u32 %s514, 2
        %s519 = smul.u32 %s518, 8
        %s520 = sadd.s32 %s519, %s517
        %s521 = scalar_lea.vmem %s242, %s520
        %522 = vst.msk [vmem:[%s521] ss:$8 sm:$0x3] %vm513, %v508
        %523 = vst.msk [vmem:[%s521] ss:$8 sm:$0x0] %vm513, %v508
      $region44: #{cpn_context_matching.2} parent=31 // loop_footer
        %s453 = sadd.s32 1, %s449
      $region45: #{cpn_context_matching.2} parent=31 // loop_footer_branch
        %448 = sbr.rel target = $region41
      $region46: #{cpn_context_matching.2} parent=31 // loop_exit
        _
      %v526 = vcombine.low %v446, %v447
      %v528 = vunpack.c.l.s4 1966171168
      %v529 = vunpack.c.0.s8 %v528
      %v530 = vlaneseq
      %v531 = vshrl.u32 %v530, 7
      %v532 = vsub.s32 %v529, %v531
      %v533 = vrot.slane %v526, %v532
      %v535 = vunpack.c.l.s4 1966171168
      %v536 = vunpack.c.0.s8 %v535
      %v537 = vlaneseq
      %v538 = vshrl.u32 %v537, 7
      %v539 = vsub.s32 %v536, %v538
      %v540 = vrot.slane %v533, %v539
      %v542 = vlaneseq
      %vm543 = vcmp.ge.s32.totalorder %v542, 0
      %vm544 = vcmp.lt.s32.totalorder %v542, 256
      %vm545 = vmand %vm543, %vm544
      %s546 = scalar_lea.vmem %s242, 4
      %547 = vst.msk [vmem:[%s546] ss:$8 sm:$0x3] %vm545, %v540
      %548 = vst.msk [vmem:[%s546] ss:$8 sm:$0x0] %vm545, %v540
      %p549 = scmp.lt.s32.totalorder %s16, 1
      %s550 = scalar_select %p549, %s16, 1
      %s551 = smul.addr %s550, 2
      %s552 = smul.addr %s551, 8
      %s553 = scalar_lea.vmem %s3, %s552
      %p554 = scmp.lt.s32.totalorder %s16, 1
      %s555 = scalar_select %p554, %s16, 1
      %s556 = smul.addr %s555, 2
      %s557 = smul.addr %s556, 4
      %s558 = scalar_lea.vmem %s4, %s557
      // Predicated region
      $region47: #{cpn_context_matching.2} parent=31 // pred_check
        %p559 = pneg %p112
      $region48: #{cpn_context_matching.2} parent=31 // pred_check_branch
        %561 = sbr.rel (%p559) target = $region50
      $region49: #{cpn_context_matching.2} parent=31 // pred_region
        _
      $region50: #{cpn_context_matching.2} parent=31 // pred_fallthru
        _
      // Predicated region
      $region51: #{cpn_context_matching.2} parent=31 // pred_check
        %p562 = pneg %p138
      $region52: #{cpn_context_matching.2} parent=31 // pred_check_branch
        %564 = sbr.rel (%p562) target = $region54
      $region53: #{cpn_context_matching.2} parent=31 // pred_region
        _
      $region54: #{cpn_context_matching.2} parent=31 // pred_fallthru
        _
    $region32: #{cpn_context_matching.2} parent=5 // pred_fallthru
      _
    %p565 = scmp.le.s32.totalorder 2, %s11
    // Predicated region
    $region55: #{cpn_context_matching.2} parent=5 // pred_check
      %p566 = pneg %p565
    $region56: #{cpn_context_matching.2} parent=5 // pred_check_branch
      %568 = sbr.rel (%p566) target = $region58
    $region57: #{cpn_context_matching.2} parent=5 // pred_region
      %s569 = ssub.s32 %s11, 2
      // Predicated region
      $region59: #{cpn_context_matching.2} parent=57 // pred_check
        %p570 = pneg %p118
      $region60: #{cpn_context_matching.2} parent=57 // pred_check_branch
        %572 = sbr.rel (%p570) target = $region62
      $region61: #{cpn_context_matching.2} parent=57 // pred_region
        %p573 = scmp.lt.s32.totalorder %s17, 1
        %s574 = scalar_select %p573, %s17, 1
        %s575 = smul.addr %s574, 2
        %s576 = smul.addr %s575, 8
        %s577 = scalar_lea.vmem %s3, %s576
      $region62: #{cpn_context_matching.2} parent=57 // pred_fallthru
        _
      // Predicated region
      $region63: #{cpn_context_matching.2} parent=57 // pred_check
        %p578 = pneg %p144
      $region64: #{cpn_context_matching.2} parent=57 // pred_check_branch
        %580 = sbr.rel (%p578) target = $region66
      $region65: #{cpn_context_matching.2} parent=57 // pred_region
        %p581 = scmp.lt.s32.totalorder %s17, 1
        %s582 = scalar_select %p581, %s17, 1
        %s583 = smul.addr %s582, 2
        %s584 = smul.addr %s583, 4
        %s585 = scalar_lea.vmem %s4, %s584
      $region66: #{cpn_context_matching.2} parent=57 // pred_fallthru
        _
    $region58: #{cpn_context_matching.2} parent=5 // pred_fallthru
      _
  $region6: #{cpn_context_matching.2} parent=0 // loop_footer
    %s15 = sadd.s32 1, %s11
  $region7: #{cpn_context_matching.2} parent=0 // loop_footer_branch
    %10 = sbr.rel target = $region3
  $region8: #{cpn_context_matching.2} parent=0 // loop_exit
    _

// kernel: cpn_context_matching.3
$region0: #{cpn_context_matching.3}
  #allocation0 [shape = 'u32[]', space=smem, size = 0x4, offset = 0x4, fixed_abs, tag = 'smem constant byte address 0x4 - core index']
  #allocation1 [shape = 'u32[144,128]{1,0:T(1,128)}', space=vmem, size = 0x12000, scoped, tag = 'internal scratch']
  %s0 = inlined_call_operand.vmem [shape: f32[2,3,1024], index: 0, kind: input, shape index: {}]
  %s1 = inlined_call_operand.vmem [shape: f32[2,1,1024], index: 1, kind: input, shape index: {}]
  %s2 = inlined_call_operand.vmem [shape: f32[2,1,1024], index: 2, kind: input, shape index: {}]
  %s3 = inlined_call_operand.vmem [shape: f32[2,3,4,1024], index: 3, kind: output, shape index: {}]
  %s4 = sld [smem:[#allocation0]]
  $region45: #{cpn_context_matching.3} parent=0
    _
  %s6 = ssub.s32 1, %s4
  %s7 = scalar_select 0, %s6, %s4
  loop: start=0, step=1, limit=4
  $region2: #{cpn_context_matching.3} parent=0 // loop_pre_header
    _
  $region3: #{cpn_context_matching.3} parent=0 // loop_header
    %s9 = sphi 0, %s13
    %p10 = scmp.ge.s32.totalorder %s9, 4
    %s16 = sphi 0, %s28
    %s17 = sphi 0, %s24
    %s18 = sphi 0, %s16
    %s19 = sphi 0, %s17
    %s20 = sphi 0, %s18
    %s21 = sphi 0, %s19
    %s33 = sphi 0, %s35
    %s36 = sphi 0, %s33
    %s37 = sphi 0, %s36
    %s53 = sphi 0, %s37
    %s61 = sphi 0, %s63
    %s64 = sphi 0, %s61
    %s65 = sphi 0, %s64
    %s81 = sphi 0, %s65
    %s89 = sphi 0, %s91
    %s92 = sphi 0, %s89
    %s93 = sphi 0, %s92
    %s109 = sphi 0, %s93
    %s117 = sphi 0, %s119
    %s120 = sphi 0, %s117
    %s121 = sphi 0, %s120
    %s137 = sphi 0, %s121
  $region4: #{cpn_context_matching.3} parent=0 // loop_header_branch
    %12 = sbr.rel (%p10) target = $region8
  $region5: #{cpn_context_matching.3} parent=0 // loop_body
    %s14 = ssub.s32 %s9, 1
    %s15 = ssub.s32 %s9, 2
    %s22 = sadd.s32 1, %s17
    %p23 = scmp.ge.s32.totalorder %s22, 1
    %s24 = scalar_select %p23, 0, %s22
    %s25 = sadd.s32 1, %s16
    %s26 = scalar_select %p23, %s25, %s16
    %p27 = scmp.ge.s32.totalorder %s26, 2
    %s28 = scalar_select %p27, 0, %s26
    %s29 = ssub.s32 %s16, %s28
    %s30 = ssub.s32 %s17, %s24
    %s31 = sor.u32 %s29, %s30
    %p32 = scmp.eq.s32.totalorder %s31, 0
    %s34 = sadd.s32 %s33, 1
    %s35 = scalar_select %p32, %s33, %s34
    %p38 = pneg %p32
    %p39 = scmp.eq.s32.totalorder %s9, 1
    %p40 = por %p38, %p39
    %p41 = scmp.ne.s32.totalorder %s33, %s36
    %p42 = scmp.eq.s32.totalorder %s9, 0
    %p43 = por %p41, %p42
    %p44 = scmp.ne.s32.totalorder %s33, %s36
    %p45 = scmp.eq.s32.totalorder %s14, 1
    %p46 = por %p44, %p45
    %p47 = scmp.ne.s32.totalorder %s36, %s37
    %p48 = scmp.eq.s32.totalorder %s14, 0
    %p49 = por %p47, %p48
    %p50 = scmp.ne.s32.totalorder %s36, %s37
    %p51 = scmp.eq.s32.totalorder %s15, 1
    %p52 = por %p50, %p51
    %p54 = scmp.ne.s32.totalorder %s37, %s53
    %p55 = scmp.eq.s32.totalorder %s15, 0
    %p56 = por %p54, %p55
    %s57 = ssub.s32 %s16, %s28
    %s58 = ssub.s32 %s17, %s24
    %s59 = sor.u32 %s57, %s58
    %p60 = scmp.eq.s32.totalorder %s59, 0
    %s62 = sadd.s32 %s61, 1
    %s63 = scalar_select %p60, %s61, %s62
    %p66 = pneg %p60
    %p67 = scmp.eq.s32.totalorder %s9, 1
    %p68 = por %p66, %p67
    %p69 = scmp.ne.s32.totalorder %s61, %s64
    %p70 = scmp.eq.s32.totalorder %s9, 0
    %p71 = por %p69, %p70
    %p72 = scmp.ne.s32.totalorder %s61, %s64
    %p73 = scmp.eq.s32.totalorder %s14, 1
    %p74 = por %p72, %p73
    %p75 = scmp.ne.s32.totalorder %s64, %s65
    %p76 = scmp.eq.s32.totalorder %s14, 0
    %p77 = por %p75, %p76
    %p78 = scmp.ne.s32.totalorder %s64, %s65
    %p79 = scmp.eq.s32.totalorder %s15, 1
    %p80 = por %p78, %p79
    %p82 = scmp.ne.s32.totalorder %s65, %s81
    %p83 = scmp.eq.s32.totalorder %s15, 0
    %p84 = por %p82, %p83
    %s85 = ssub.s32 %s16, %s28
    %s86 = ssub.s32 %s17, %s24
    %s87 = sor.u32 %s85, %s86
    %p88 = scmp.eq.s32.totalorder %s87, 0
    %s90 = sadd.s32 %s89, 1
    %s91 = scalar_select %p88, %s89, %s90
    %p94 = pneg %p88
    %p95 = scmp.eq.s32.totalorder %s9, 1
    %p96 = por %p94, %p95
    %p97 = scmp.ne.s32.totalorder %s89, %s92
    %p98 = scmp.eq.s32.totalorder %s9, 0
    %p99 = por %p97, %p98
    %p100 = scmp.ne.s32.totalorder %s89, %s92
    %p101 = scmp.eq.s32.totalorder %s14, 1
    %p102 = por %p100, %p101
    %p103 = scmp.ne.s32.totalorder %s92, %s93
    %p104 = scmp.eq.s32.totalorder %s14, 0
    %p105 = por %p103, %p104
    %p106 = scmp.ne.s32.totalorder %s92, %s93
    %p107 = scmp.eq.s32.totalorder %s15, 1
    %p108 = por %p106, %p107
    %p110 = scmp.ne.s32.totalorder %s93, %s109
    %p111 = scmp.eq.s32.totalorder %s15, 0
    %p112 = por %p110, %p111
    %s113 = ssub.s32 %s16, %s28
    %s114 = ssub.s32 %s17, %s24
    %s115 = sor.u32 %s113, %s114
    %p116 = scmp.eq.s32.totalorder %s115, 0
    %s118 = sadd.s32 %s117, 1
    %s119 = scalar_select %p116, %s117, %s118
    %p122 = pneg %p116
    %p123 = scmp.eq.s32.totalorder %s9, 1
    %p124 = por %p122, %p123
    %p125 = scmp.ne.s32.totalorder %s117, %s120
    %p126 = scmp.eq.s32.totalorder %s9, 0
    %p127 = por %p125, %p126
    %p128 = scmp.ne.s32.totalorder %s117, %s120
    %p129 = scmp.eq.s32.totalorder %s14, 1
    %p130 = por %p128, %p129
    %p131 = scmp.ne.s32.totalorder %s120, %s121
    %p132 = scmp.eq.s32.totalorder %s14, 0
    %p133 = por %p131, %p132
    %p134 = scmp.ne.s32.totalorder %s120, %s121
    %p135 = scmp.eq.s32.totalorder %s15, 1
    %p136 = por %p134, %p135
    %p138 = scmp.ne.s32.totalorder %s121, %s137
    %p139 = scmp.eq.s32.totalorder %s15, 0
    %p140 = por %p138, %p139
    %p141 = scmp.le.s32.totalorder 1, %s9
    %p142 = scmp.lt.s32.totalorder %s9, 3
    %p143 = pnand %p141, %p142
    %p144 = pneg %p143
    // Predicated region
    $region9: #{cpn_context_matching.3} parent=5 // pred_check
      _
    $region10: #{cpn_context_matching.3} parent=5 // pred_check_branch
      %146 = sbr.rel (%p143) target = $region12
    $region11: #{cpn_context_matching.3} parent=5 // pred_region
      %s147 = ssub.s32 %s9, 1
    $region12: #{cpn_context_matching.3} parent=5 // pred_fallthru
      _
    %p148 = scmp.lt.s32.totalorder %s9, 2
    // Predicated region
    $region13: #{cpn_context_matching.3} parent=5 // pred_check
      %p149 = pneg %p148
    $region14: #{cpn_context_matching.3} parent=5 // pred_check_branch
      %151 = sbr.rel (%p149) target = $region16
    $region15: #{cpn_context_matching.3} parent=5 // pred_region
      // Predicated region
      $region17: #{cpn_context_matching.3} parent=15 // pred_check
        %p152 = pneg %p43
      $region18: #{cpn_context_matching.3} parent=15 // pred_check_branch
        %154 = sbr.rel (%p152) target = $region20
      $region19: #{cpn_context_matching.3} parent=15 // pred_region
        %s155 = smul.u32 8, %s17
        %p156 = scmp.lt.s32.totalorder %s16, 1
        %s157 = scalar_select %p156, %s16, 1
        %p158 = scmp.lt.s32.totalorder %s155, 7
        %s159 = scalar_select %p158, %s155, 7
        %s160 = smul.addr %s157, 8
        %s161 = sadd.s32 %s159, %s160
        %s162 = smul.addr %s161, 4
        %s163 = scalar_lea.vmem %s0, %s162
        %s164 = smul.u32 8, %s17
      $region20: #{cpn_context_matching.3} parent=15 // pred_fallthru
        _
      // Predicated region
      $region21: #{cpn_context_matching.3} parent=15 // pred_check
        %p165 = pneg %p71
      $region22: #{cpn_context_matching.3} parent=15 // pred_check_branch
        %167 = sbr.rel (%p165) target = $region24
      $region23: #{cpn_context_matching.3} parent=15 // pred_region
        %s168 = smul.u32 8, %s17
        %p169 = scmp.lt.s32.totalorder %s16, 1
        %s170 = scalar_select %p169, %s16, 1
        %p171 = scmp.lt.s32.totalorder %s168, 7
        %s172 = scalar_select %p171, %s168, 7
        %s173 = smul.addr %s170, 8
        %s174 = sadd.s32 %s172, %s173
        %s175 = scalar_lea.vmem %s1, %s174
        %s176 = smul.u32 8, %s17
      $region24: #{cpn_context_matching.3} parent=15 // pred_fallthru
        _
      // Predicated region
      $region25: #{cpn_context_matching.3} parent=15 // pred_check
        %p177 = pneg %p99
      $region26: #{cpn_context_matching.3} parent=15 // pred_check_branch
        %179 = sbr.rel (%p177) target = $region28
      $region27: #{cpn_context_matching.3} parent=15 // pred_region
        %s180 = smul.u32 8, %s17
        %p181 = scmp.lt.s32.totalorder %s16, 1
        %s182 = scalar_select %p181, %s16, 1
        %p183 = scmp.lt.s32.totalorder %s180, 7
        %s184 = scalar_select %p183, %s180, 7
        %s185 = smul.addr %s182, 8
        %s186 = sadd.s32 %s184, %s185
        %s187 = scalar_lea.vmem %s2, %s186
        %s188 = smul.u32 8, %s17
      $region28: #{cpn_context_matching.3} parent=15 // pred_fallthru
        _
    $region16: #{cpn_context_matching.3} parent=5 // pred_fallthru
      _
    %p189 = scmp.le.s32.totalorder 1, %s9
    %p190 = scmp.lt.s32.totalorder %s9, 3
    %p191 = pnand %p189, %p190
    %p192 = pneg %p191
    // Predicated region
    $region29: #{cpn_context_matching.3} parent=5 // pred_check
      _
    $region30: #{cpn_context_matching.3} parent=5 // pred_check_branch
      %194 = sbr.rel (%p191) target = $region32
    $region31: #{cpn_context_matching.3} parent=5 // pred_region
      %s195 = ssub.s32 %s9, 1
      %s196 = smul.u32 8, %s19
      %p197 = scmp.lt.s32.totalorder %s18, 1
      %s198 = scalar_select %p197, %s18, 1
      %p199 = scmp.lt.s32.totalorder %s196, 7
      %s200 = scalar_select %p199, %s196, 7
      %s201 = smul.addr %s198, 8
      %s202 = sadd.s32 %s200, %s201
      %s203 = smul.addr %s202, 4
      %s204 = scalar_lea.vmem %s0, %s203
      %p205 = pneg %p49
      %p206 = pneg %p46
      %s207 = smul.u32 8, %s19
      %p208 = scmp.lt.s32.totalorder %s18, 1
      %s209 = scalar_select %p208, %s18, 1
      %p210 = scmp.lt.s32.totalorder %s207, 7
      %s211 = scalar_select %p210, %s207, 7
      %s212 = smul.addr %s209, 8
      %s213 = sadd.s32 %s211, %s212
      %s214 = scalar_lea.vmem %s1, %s213
      %p215 = pneg %p77
      %p216 = pneg %p74
      %s217 = smul.u32 8, %s19
      %p218 = scmp.lt.s32.totalorder %s18, 1
      %s219 = scalar_select %p218, %s18, 1
      %p220 = scmp.lt.s32.totalorder %s217, 7
      %s221 = scalar_select %p220, %s217, 7
      %s222 = smul.addr %s219, 8
      %s223 = sadd.s32 %s221, %s222
      %s224 = scalar_lea.vmem %s2, %s223
      %p225 = pneg %p105
      %p226 = pneg %p102
      %p227 = pneg %p133
      %p228 = pneg %p130
      %s229 = smul.u32 8, %s19
      %p230 = scmp.lt.s32.totalorder %s18, 1
      %s231 = scalar_select %p230, %s18, 1
      %p232 = scmp.lt.s32.totalorder %s229, 7
      %s233 = scalar_select %p232, %s229, 7
      %s234 = smul.addr %s231, 24
      %s235 = sadd.s32 %s233, %s234
      %s236 = smul.addr %s235, 4
      %s237 = scalar_lea.vmem %s3, %s236
      %s238 = smul.u32 8, %s19
      %p239 = scmp.lt.s32.totalorder %s18, 1
      %s240 = scalar_select %p239, %s18, 1
      %p241 = scmp.lt.s32.totalorder %s238, 7
      %s242 = scalar_select %p241, %s238, 7
      %s243 = smul.addr %s240, 8
      %s244 = sadd.s32 %s242, %s243
      %s245 = smul.addr %s244, 4
      %s246 = scalar_lea.vmem %s0, %s245
      %s247 = smul.u32 8, %s19
      %s248 = smul.u32 8, %s19
      %p249 = scmp.lt.s32.totalorder %s18, 1
      %s250 = scalar_select %p249, %s18, 1
      %p251 = scmp.lt.s32.totalorder %s248, 7
      %s252 = scalar_select %p251, %s248, 7
      %s253 = smul.addr %s250, 8
      %s254 = sadd.s32 %s252, %s253
      %s255 = scalar_lea.vmem %s1, %s254
      %s256 = smul.u32 8, %s19
      %s257 = smul.u32 8, %s19
      %p258 = scmp.lt.s32.totalorder %s18, 1
      %s259 = scalar_select %p258, %s18, 1
      %p260 = scmp.lt.s32.totalorder %s257, 7
      %s261 = scalar_select %p260, %s257, 7
      %s262 = smul.addr %s259, 8
      %s263 = sadd.s32 %s261, %s262
      %s264 = scalar_lea.vmem %s2, %s263
      %s265 = smul.u32 8, %s19
      %s266 = smul.u32 8, %s19
      %p267 = scmp.lt.s32.totalorder %s18, 1
      %s268 = scalar_select %p267, %s18, 1
      %p269 = scmp.lt.s32.totalorder %s266, 7
      %s270 = scalar_select %p269, %s266, 7
      %s271 = smul.addr %s268, 24
      %s272 = sadd.s32 %s270, %s271
      %s273 = smul.addr %s272, 4
      %s274 = scalar_lea.vmem %s3, %s273
      %s275 = smul.u32 8, %s19
      %v276 = vld [vmem:[%s246] sm:$0x77]
      %v277 = vld [vmem:[%s246 + $0x8] sm:$0x77]
      %v278 = vld [vmem:[%s246 + $0x10] sm:$0x77]
      %v279 = vld [vmem:[%s246 + $0x18] sm:$0x77]
      %v280 = vld [vmem:[%s255] sm:$0xff]
      %v281 = vld [vmem:[%s264] sm:$0xff]
      %v286 = vlaneseq
      %v287 = vshrl.u32 %v286, 7
      %v288 = vsub.s32 0, %v287
      %v289 = vrot.slane %v276, %v288
      %v290 = vlaneseq
      %v291 = vshrl.u32 %v290, 7
      %v292 = vsub.s32 4, %v291
      %v293 = vrot.slane %v276, %v292
      %v294 = vlaneseq
      %v295 = vshrl.u32 %v294, 7
      %v296 = vsub.s32 0, %v295
      %v297 = vrot.slane %v277, %v296
      %v298 = vlaneseq
      %v299 = vshrl.u32 %v298, 7
      %v300 = vsub.s32 4, %v299
      %v301 = vrot.slane %v277, %v300
      %v302 = vlaneseq
      %v303 = vshrl.u32 %v302, 7
      %v304 = vsub.s32 0, %v303
      %v305 = vrot.slane %v278, %v304
      %v306 = vlaneseq
      %v307 = vshrl.u32 %v306, 7
      %v308 = vsub.s32 4, %v307
      %v309 = vrot.slane %v278, %v308
      %v310 = vlaneseq
      %v311 = vshrl.u32 %v310, 7
      %v312 = vsub.s32 0, %v311
      %v313 = vrot.slane %v279, %v312
      %v314 = vlaneseq
      %v315 = vshrl.u32 %v314, 7
      %v316 = vsub.s32 4, %v315
      %v317 = vrot.slane %v279, %v316
      %v327 = vlaneseq
      %v328 = vshrl.u32 %v327, 7
      %v329 = vsub.s32 0, %v328
      %v330 = vrot.slane %v280, %v329
      %v331 = vlaneseq
      %v332 = vshrl.u32 %v331, 7
      %v333 = vsub.s32 1, %v332
      %v334 = vrot.slane %v280, %v333
      %v335 = vlaneseq
      %v336 = vshrl.u32 %v335, 7
      %v337 = vsub.s32 2, %v336
      %v338 = vrot.slane %v280, %v337
      %v339 = vlaneseq
      %v340 = vshrl.u32 %v339, 7
      %v341 = vsub.s32 3, %v340
      %v342 = vrot.slane %v280, %v341
      %v343 = vlaneseq
      %v344 = vshrl.u32 %v343, 7
      %v345 = vsub.s32 4, %v344
      %v346 = vrot.slane %v280, %v345
      %v347 = vlaneseq
      %v348 = vshrl.u32 %v347, 7
      %v349 = vsub.s32 5, %v348
      %v350 = vrot.slane %v280, %v349
      %v351 = vlaneseq
      %v352 = vshrl.u32 %v351, 7
      %v353 = vsub.s32 6, %v352
      %v354 = vrot.slane %v280, %v353
      %v355 = vlaneseq
      %v356 = vshrl.u32 %v355, 7
      %v357 = vsub.s32 7, %v356
      %v358 = vrot.slane %v280, %v357
      %v367 = vcombine.high %v276, %v276
      %v368 = vcombine.high %v277, %v277
      %v369 = vcombine.high %v278, %v278
      %v370 = vcombine.high %v279, %v279
      %v371 = vrot.slane %v276, 7
      %v372 = vrot.slane %v367, 7
      %v373 = vrot.slane %v277, 7
      %v374 = vrot.slane %v368, 7
      %v375 = vrot.slane %v278, 7
      %v376 = vrot.slane %v369, 7
      %v377 = vrot.slane %v279, 7
      %v378 = vrot.slane %v370, 7
      %vm387 = vcmask 1040384
      %v388 = vsel %vm387, %v289, %v330
      %v389 = vsel %vm387, %v293, %v334
      %v390 = vsel %vm387, %v297, %v338
      %v391 = vsel %vm387, %v301, %v342
      %v392 = vsel %vm387, %v305, %v346
      %v393 = vsel %vm387, %v309, %v350
      %v394 = vsel %vm387, %v313, %v354
      %v395 = vsel %vm387, %v317, %v358
      %vm396 = vcmask 1041408
      %v397 = vsel %vm396, %v388, %v371
      %v398 = vsel %vm396, %v389, %v372
      %v399 = vsel %vm396, %v390, %v373
      %v400 = vsel %vm396, %v391, %v374
      %v401 = vsel %vm396, %v392, %v375
      %v402 = vsel %vm396, %v393, %v376
      %v403 = vsel %vm396, %v394, %v377
      %v404 = vsel %vm396, %v395, %v378
      %v405 = vsub.f32 1.0, %v281
      %v407 = vlaneseq
      %v408 = vshrl.u32 %v407, 7
      %v409 = vsub.s32 0, %v408
      %v410 = vrot.slane %v405, %v409
      %v411 = vlaneseq
      %v412 = vshrl.u32 %v411, 7
      %v413 = vsub.s32 1, %v412
      %v414 = vrot.slane %v405, %v413
      %v415 = vlaneseq
      %v416 = vshrl.u32 %v415, 7
      %v417 = vsub.s32 2, %v416
      %v418 = vrot.slane %v405, %v417
      %v419 = vlaneseq
      %v420 = vshrl.u32 %v419, 7
      %v421 = vsub.s32 3, %v420
      %v422 = vrot.slane %v405, %v421
      %v423 = vlaneseq
      %v424 = vshrl.u32 %v423, 7
      %v425 = vsub.s32 4, %v424
      %v426 = vrot.slane %v405, %v425
      %v427 = vlaneseq
      %v428 = vshrl.u32 %v427, 7
      %v429 = vsub.s32 5, %v428
      %v430 = vrot.slane %v405, %v429
      %v431 = vlaneseq
      %v432 = vshrl.u32 %v431, 7
      %v433 = vsub.s32 6, %v432
      %v434 = vrot.slane %v405, %v433
      %v435 = vlaneseq
      %v436 = vshrl.u32 %v435, 7
      %v437 = vsub.s32 7, %v436
      %v438 = vrot.slane %v405, %v437
      %v447 = vmul.f32 %v397, %v410
      %v448 = vmul.f32 %v398, %v414
      %v449 = vmul.f32 %v399, %v418
      %v450 = vmul.f32 %v400, %v422
      %v451 = vmul.f32 %v401, %v426
      %v452 = vmul.f32 %v402, %v430
      %v453 = vmul.f32 %v403, %v434
      %v454 = vmul.f32 %v404, %v438
      %v456 = vlaneseq
      %v457 = vshrl.u32 %v456, 7
      %v458 = vsub.s32 0, %v457
      %v459 = vrot.slane %v281, %v458
      %v460 = vlaneseq
      %v461 = vshrl.u32 %v460, 7
      %v462 = vsub.s32 1, %v461
      %v463 = vrot.slane %v281, %v462
      %v464 = vlaneseq
      %v465 = vshrl.u32 %v464, 7
      %v466 = vsub.s32 2, %v465
      %v467 = vrot.slane %v281, %v466
      %v468 = vlaneseq
      %v469 = vshrl.u32 %v468, 7
      %v470 = vsub.s32 3, %v469
      %v471 = vrot.slane %v281, %v470
      %v472 = vlaneseq
      %v473 = vshrl.u32 %v472, 7
      %v474 = vsub.s32 4, %v473
      %v475 = vrot.slane %v281, %v474
      %v476 = vlaneseq
      %v477 = vshrl.u32 %v476, 7
      %v478 = vsub.s32 5, %v477
      %v479 = vrot.slane %v281, %v478
      %v480 = vlaneseq
      %v481 = vshrl.u32 %v480, 7
      %v482 = vsub.s32 6, %v481
      %v483 = vrot.slane %v281, %v482
      %v484 = vlaneseq
      %v485 = vshrl.u32 %v484, 7
      %v486 = vsub.s32 7, %v485
      %v487 = vrot.slane %v281, %v486
      %v496 = vadd.f32 %v447, %v459
      %v497 = vadd.f32 %v448, %v463
      %v498 = vadd.f32 %v449, %v467
      %v499 = vadd.f32 %v450, %v471
      %v500 = vadd.f32 %v451, %v475
      %v501 = vadd.f32 %v452, %v479
      %v502 = vadd.f32 %v453, %v483
      %v503 = vadd.f32 %v454, %v487
      %v512 = vcombine.low %v496, %v497
      %v513 = vcombine.low %v498, %v499
      %v514 = vcombine.low %v500, %v501
      %v515 = vcombine.low %v502, %v503
      %520 = vst [vmem:[%s274] sm:$0xff] %v512
      %521 = vst [vmem:[%s274 + $0x8] sm:$0xff] %v513
      %522 = vst [vmem:[%s274 + $0x10] sm:$0xff] %v514
      %523 = vst [vmem:[%s274 + $0x18] sm:$0xff] %v515
      %v532 = vcombine.low %v447, %v448
      %v533 = vcombine.low %v449, %v450
      %v534 = vcombine.low %v451, %v452
      %v535 = vcombine.low %v453, %v454
      %s540 = scalar_lea.vmem %s274, 32
      %541 = vst [vmem:[%s540] sm:$0xff] %v532
      %542 = vst [vmem:[%s540 + $0x8] sm:$0xff] %v533
      %543 = vst [vmem:[%s540 + $0x10] sm:$0xff] %v534
      %544 = vst [vmem:[%s540 + $0x18] sm:$0xff] %v535
      %s545 = scalar_lea.vmem %s274, 64
      %546 = vst [vmem:[%s545] sm:$0xff] %v532
      %547 = vst [vmem:[%s545 + $0x8] sm:$0xff] %v533
      %548 = vst [vmem:[%s545 + $0x10] sm:$0xff] %v534
      %549 = vst [vmem:[%s545 + $0x18] sm:$0xff] %v535
      %s550 = smul.u32 8, %s19
      %p551 = scmp.lt.s32.totalorder %s18, 1
      %s552 = scalar_select %p551, %s18, 1
      %p553 = scmp.lt.s32.totalorder %s550, 7
      %s554 = scalar_select %p553, %s550, 7
      %s555 = smul.addr %s552, 24
      %s556 = sadd.s32 %s554, %s555
      %s557 = smul.addr %s556, 4
      %s558 = scalar_lea.vmem %s3, %s557
      // Predicated region
      $region33: #{cpn_context_matching.3} parent=31 // pred_check
        %p559 = pneg %p130
      $region34: #{cpn_context_matching.3} parent=31 // pred_check_branch
        %561 = sbr.rel (%p559) target = $region36
      $region35: #{cpn_context_matching.3} parent=31 // pred_region
        %s562 = smul.u32 8, %s19
      $region36: #{cpn_context_matching.3} parent=31 // pred_fallthru
        _
    $region32: #{cpn_context_matching.3} parent=5 // pred_fallthru
      _
    %p563 = scmp.le.s32.totalorder 2, %s9
    // Predicated region
    $region37: #{cpn_context_matching.3} parent=5 // pred_check
      %p564 = pneg %p563
    $region38: #{cpn_context_matching.3} parent=5 // pred_check_branch
      %566 = sbr.rel (%p564) target = $region40
    $region39: #{cpn_context_matching.3} parent=5 // pred_region
      %s567 = ssub.s32 %s9, 2
      // Predicated region
      $region41: #{cpn_context_matching.3} parent=39 // pred_check
        %p568 = pneg %p136
      $region42: #{cpn_context_matching.3} parent=39 // pred_check_branch
        %570 = sbr.rel (%p568) target = $region44
      $region43: #{cpn_context_matching.3} parent=39 // pred_region
        %s571 = smul.u32 8, %s21
        %p572 = scmp.lt.s32.totalorder %s20, 1
        %s573 = scalar_select %p572, %s20, 1
        %p574 = scmp.lt.s32.totalorder %s571, 7
        %s575 = scalar_select %p574, %s571, 7
        %s576 = smul.addr %s573, 24
        %s577 = sadd.s32 %s575, %s576
        %s578 = smul.addr %s577, 4
        %s579 = scalar_lea.vmem %s3, %s578
      $region44: #{cpn_context_matching.3} parent=39 // pred_fallthru
        _
    $region40: #{cpn_context_matching.3} parent=5 // pred_fallthru
      _
  $region6: #{cpn_context_matching.3} parent=0 // loop_footer
    %s13 = sadd.s32 1, %s9
  $region7: #{cpn_context_matching.3} parent=0 // loop_footer_branch
    %8 = sbr.rel target = $region3
  $region8: #{cpn_context_matching.3} parent=0 // loop_exit
    _

</llo_original>
